<compile_context>
chip_gen: v7x
topology: tpu7x:2x2x1
jax: 0.10.0
libtpu: 0.0.40
codegen_flags: <defaults>
</compile_context>

<pallas_src>
import numpy as np

import jax
import jax.numpy as jnp
from jax.experimental import pallas as pl
from jax.experimental.pallas import tpu as pltpu

LANE = 128
SUBLANE = 8
BT_CAP = 1024          # batch-tile cap (multiple of 8); ~1.5 MiB f32 out slab


def _round_up(x, m):
    return ((x + m - 1) // m) * m


def _cdiv(a, b):
    return (a + b - 1) // b


def _pad_mat(w, rows, cols):
    w = np.asarray(w, np.float32)
    out = np.zeros((rows, cols), np.float32)
    out[: w.shape[0], : w.shape[1]] = w
    return out


def _pad_bias(b, cols):
    b = np.asarray(b, np.float32).reshape(-1)
    out = np.zeros((1, cols), np.float32)
    out[0, : b.shape[0]] = b
    return jnp.asarray(out)                       # biases stay f32


def _init_linear(key, in_dim, out_dim):
    kw, kb = jax.random.split(key)
    bound = 1.0 / np.sqrt(in_dim)
    w = jax.random.uniform(kw, (in_dim, out_dim), jnp.float32, -bound, bound)
    b = jax.random.uniform(kb, (out_dim,), jnp.float32, -bound, bound)
    return w, b


class AdFeaturesPredictorPallas:
    def __init__(self, input_cardinalities, embedding_dims, hidden_dim_specs,
                 output_cardinalities, residual_connections=False, *, key):
        assert len(input_cardinalities) == len(embedding_dims)
        assert len(hidden_dim_specs) == len(output_cardinalities)
        self.residual_connections = residual_connections
        self.num_features = len(input_cardinalities)
        self.input_cardinalities = list(input_cardinalities)
        self.embedding_dims = list(embedding_dims)
        self.output_cardinalities = list(output_cardinalities)

        keys = jax.random.split(key, 2)

        # MultiEmbedder: one (cardinality, embed_dim) table per input feature.
        emb_keys = jax.random.split(keys[0], self.num_features)
        self.embed_tables = [
            jax.random.normal(k, (card, dim), jnp.float32)   # nn.Embedding ~ N(0,1)
            for k, card, dim in zip(emb_keys, input_cardinalities, embedding_dims)
        ]
        self.embed_output_size = int(sum(embedding_dims))

        # FeatureBlocks (raw, unpadded f32 params — also used by the JAX ref).
        self.blocks = []
        prev_output_size = 0
        blk_keys = jax.random.split(keys[1], len(hidden_dim_specs))
        for bkey, hidden_dims, out_size in zip(blk_keys, hidden_dim_specs,
                                               output_cardinalities):
            in_size = self.embed_output_size + (
                prev_output_size if self.residual_connections else 0)
            layer_keys = jax.random.split(bkey, len(hidden_dims) + 1)
            hidden_layers = []
            d_in = in_size
            for lkey, d_out in zip(layer_keys[:-1], hidden_dims):
                hidden_layers.append(_init_linear(lkey, d_in, d_out))
                d_in = d_out
            out_w, out_b = _init_linear(layer_keys[-1], hidden_dims[-1], out_size)
            self.blocks.append(
                dict(hidden=hidden_layers, out_w=out_w, out_b=out_b))
            prev_output_size = hidden_dims[-1]   # feature_block.hidden_size

        self._build_fused()

    # ------------------------------------------------------------------
    # Padded, lane-dense, bf16 parameter set for the fused kernel.
    # ------------------------------------------------------------------
    def _build_fused(self):
        E = self.embed_output_size

        card_offsets, off = [], 0
        for c in self.input_cardinalities:
            card_offsets.append(off)
            off += c
        Ctot = off
        Ctot_pad = _round_up(Ctot, LANE)

        # Block-diagonal stacked embedding table (unpadded, f32) — only used
        # at init to FOLD the lookup into each block's first-layer weight.
        stacked = np.zeros((Ctot, E), np.float32)
        r, c0 = 0, 0
        for tab in self.embed_tables:
            card, dim = tab.shape
            stacked[r:r + card, c0:c0 + dim] = np.asarray(tab)
            r += card
            c0 += dim

        first_cols = []          # per-block folded (Ctot_pad, D0_pad) bf16
        flat_params, plan = [], []
        prev_H_pad = None
        for bi, block in enumerate(self.blocks):
            hidden = block["hidden"]
            entry = {}

            # First hidden layer: fold T into the embed part; keep the hidden
            # part (residual) as a separate split matmul — no concat needed.
            w0, b0 = hidden[0]
            w0_np = np.asarray(w0, np.float32)
            D0 = int(w0_np.shape[1])
            D0_pad = _round_up(D0, LANE)
            folded = stacked @ w0_np[:E, :]                        # (Ctot, D0) f32
            first_cols.append(
                jnp.asarray(_pad_mat(folded, Ctot_pad, D0_pad)).astype(jnp.bfloat16))
            if self.residual_connections and bi > 0:
                flat_params.append(
                    jnp.asarray(_pad_mat(w0_np[E:, :], prev_H_pad, D0_pad)
                                ).astype(jnp.bfloat16))
                entry["first"] = "split"
            else:
                entry["first"] = "plain"
            flat_params.append(_pad_bias(b0, D0_pad))              # f32
            entry["D0_pad"] = D0_pad
            prev_pad = D0_pad

            # Remaining hidden layers.
            for (w, b) in hidden[1:]:
                dp = _round_up(int(w.shape[1]), LANE)
                flat_params.append(
                    jnp.asarray(_pad_mat(np.asarray(w), prev_pad, dp)
                                ).astype(jnp.bfloat16))
                flat_params.append(_pad_bias(b, dp))
                prev_pad = dp
            entry["n_rest"] = len(hidden) - 1

            # Output head, lane-padded to a full 128-wide slab.
            ow, ob = block["out_w"], block["out_b"]
            O = int(ow.shape[1])
            O_pad = _round_up(O, LANE)
            flat_params.append(
                jnp.asarray(_pad_mat(np.asarray(ow), prev_pad, O_pad)
                            ).astype(jnp.bfloat16))
            flat_params.append(_pad_bias(ob, O_pad))
            entry["out_pad"] = O_pad
            entry["out_card"] = O
            plan.append(entry)

            prev_H_pad = prev_pad

        # Merged output slab offsets.
        out_offs, acc = [], 0
        for e in plan:
            out_offs.append(acc)
            acc += e["out_pad"]

        self._fused = dict(
            card_offsets=card_offsets,
            Ctot_pad=Ctot_pad,
            w_first_all=jnp.concatenate(first_cols, axis=1),   # (Ctot_pad, ΣD0_pad) bf16
            flat_params=flat_params,
            plan=plan,
            out_offs=out_offs,
            out_total=acc,
        )

    # ------------------------------------------------------------------
    # Fused Pallas kernel (one-hot + all blocks) for a batch tile of Bt rows.
    # ------------------------------------------------------------------
    def _make_kernel(self, Bt):
        fused = self._fused
        plan = fused["plan"]
        offs = fused["card_offsets"]
        Ctot_pad = fused["Ctot_pad"]
        nF = self.num_features
        n_param = len(fused["flat_params"])

        def kernel(idx_ref, wfirst_ref, *rest):
            params = rest[:n_param]
            out_ref = rest[n_param]

            # ---- one-hot: single boolean OR, converted to bf16 once -------
            iota = jax.lax.broadcasted_iota(jnp.int32, (Bt, Ctot_pad), 1)
            hit = iota == (idx_ref[:, 0:1] + offs[0])
            for i in range(1, nF):
                hit = jnp.logical_or(hit, iota == (idx_ref[:, i:i + 1] + offs[i]))
            onehot = hit.astype(jnp.bfloat16)

            # ---- one wide MXU pass: embedding lookup folded into EVERY
            #      block's first-layer embed-part weight -----------------
            x0_all = jnp.dot(onehot, wfirst_ref[...],
                             preferred_element_type=jnp.float32)   # (Bt, ΣD0_pad) f32

            # ---- feature blocks: everything stays vreg/VMEM resident -----
            hidden = None            # bf16 (Bt, prev_pad)
            ys = []
            p = 0
            col = 0
            for entry in plan:
                D0p = entry["D0_pad"]
                x = x0_all[:, col:col + D0p]
                col += D0p
                if entry["first"] == "split":
                    wh = params[p]
                    p += 1
                    x = x + jnp.dot(hidden, wh[...],
                                    preferred_element_type=jnp.float32)
                b0 = params[p]
                p += 1
                x = jnp.maximum(x + b0[...], 0.0).astype(jnp.bfloat16)
                for _ in range(entry["n_rest"]):
                    w, b = params[p], params[p + 1]
                    p += 2
                    x = jnp.maximum(
                        jnp.dot(x, w[...], preferred_element_type=jnp.float32)
                        + b[...], 0.0).astype(jnp.bfloat16)
                hidden = x
                wo, bo = params[p], params[p + 1]
                p += 2
                ys.append(jnp.dot(x, wo[...],
                                  preferred_element_type=jnp.float32) + bo[...])
            assert p == n_param   # trace-time sanity check

            merged = ys[0] if len(ys) == 1 else jnp.concatenate(ys, axis=-1)
            out_ref[...] = merged.astype(out_ref.dtype)

        return kernel

    # ------------------------------------------------------------------
    # Public forward: one pallas_call for the entire model.
    # ------------------------------------------------------------------
    def __call__(self, input_features):
        fused = self._fused
        plan = fused["plan"]
        B = int(input_features.shape[0])
        nF = self.num_features

        # Pad batch to a sublane multiple; when more than one tile is needed,
        # force an EVEN tile count so v7x's two TensorCores stay balanced.
        Bp0 = _round_up(max(B, SUBLANE), SUBLANE)
        if Bp0 <= BT_CAP:
            Bt, nb = Bp0, 1
        else:
            nb = 2 * _cdiv(Bp0, 2 * BT_CAP)
            Bt = _round_up(_cdiv(Bp0, nb), SUBLANE)
        Bp = nb * Bt

        idx = jnp.zeros((Bp, nF), jnp.int32)
        idx = idx.at[:B, :].set(input_features.astype(jnp.int32))

        kernel = self._make_kernel(Bt)
        Otot = fused["out_total"]

        in_specs = [
            pl.BlockSpec((Bt, nF), lambda i: (i, 0)),
            pl.BlockSpec(fused["w_first_all"].shape, lambda i: (0, 0)),
        ]
        for pmat in fused["flat_params"]:
            in_specs.append(pl.BlockSpec(pmat.shape, lambda i: (0, 0)))
        out_specs = pl.BlockSpec((Bt, Otot), lambda i: (i, 0))
        out_shape = jax.ShapeDtypeStruct((Bp, Otot), jnp.float32)

        out = pl.pallas_call(
            kernel,
            grid=(nb,),
            in_specs=in_specs,
            out_specs=out_specs,
            out_shape=out_shape,
            compiler_params=pltpu.CompilerParams(
                dimension_semantics=("parallel",),
                vmem_limit_bytes=32 * 1024 * 1024),
        )(idx, fused["w_first_all"], *fused["flat_params"])

        # Slice away padded batch rows and split the merged output slab.
        return tuple(out[:B, off:off + e["out_card"]]
                     for off, e in zip(fused["out_offs"], plan))

    # ------------------------------------------------------------------
    # Pure-JAX f32 reference (raw unpadded params) for correctness.
    # ------------------------------------------------------------------
    def reference_forward(self, input_features):
        parts = [tab[input_features[:, i]]
                 for i, tab in enumerate(self.embed_tables)]
        embed_x = jnp.concatenate(parts, axis=-1)
        hidden, outputs = None, []
        for block in self.blocks:
            if (not self.residual_connections) or hidden is None:
                x = embed_x
            else:
                x = jnp.concatenate([embed_x, hidden], axis=-1)
            for (w, b) in block["hidden"]:
                x = jnp.maximum(x @ w + b, 0.0)
            hidden = x
            outputs.append(x @ block["out_w"] + block["out_b"])
        return tuple(outputs)


# --------------------------------------------------------------------------
if __name__ == "__main__":
    key = jax.random.PRNGKey(0)
    k_model, k_data = jax.random.split(key)

    input_cardinalities = [11, 7, 5]
    embedding_dims = [8, 8, 16]              # -> embed size 32
    hidden_dim_specs = [[32, 32], [32], [64, 32]]
    output_cardinalities = [11, 7, 5]
    batch = 4

    model = AdFeaturesPredictorPallas(
        input_cardinalities, embedding_dims, hidden_dim_specs,
        output_cardinalities, residual_connections=True, key=k_model)

    # Integer categorical features: (batch, num_features)
    maxvals = jnp.array(input_cardinalities, dtype=jnp.int32)
    input_features = (
        jax.random.randint(k_data, (batch, len(input_cardinalities)), 0, 1 << 30)
        % maxvals).astype(jnp.int32)

    outputs = model(input_features)
    outputs = jax.block_until_ready(outputs)

    # Cross-check the fused bf16-MXU Pallas kernel against a pure-f32 JAX
    # reference (bf16 weights/activations => loosened tolerance).
    ref_outputs = model.reference_forward(input_features)
    for o, r, card in zip(outputs, ref_outputs, output_cardinalities):
        assert o.shape == (batch, card), o.shape
        np.testing.assert_allclose(np.asarray(o), np.asarray(r),
                                   rtol=5e-2, atol=5e-2)

    print("KERNEL_OK")
</pallas_src>

<mosaic_0001>
module attributes {stable_mosaic.version = 11 : i64} {
  func.func @kernel(%arg0: i32, %arg1: memref<8x3xi32, #tpu.memory_space<vmem>>, %arg2: memref<128x384xbf16, #tpu.memory_space<vmem>>, %arg3: memref<1x128xf32, #tpu.memory_space<vmem>>, %arg4: memref<128x128xbf16, #tpu.memory_space<vmem>>, %arg5: memref<1x128xf32, #tpu.memory_space<vmem>>, %arg6: memref<128x128xbf16, #tpu.memory_space<vmem>>, %arg7: memref<1x128xf32, #tpu.memory_space<vmem>>, %arg8: memref<128x128xbf16, #tpu.memory_space<vmem>>, %arg9: memref<1x128xf32, #tpu.memory_space<vmem>>, %arg10: memref<128x128xbf16, #tpu.memory_space<vmem>>, %arg11: memref<1x128xf32, #tpu.memory_space<vmem>>, %arg12: memref<128x128xbf16, #tpu.memory_space<vmem>>, %arg13: memref<1x128xf32, #tpu.memory_space<vmem>>, %arg14: memref<128x128xbf16, #tpu.memory_space<vmem>>, %arg15: memref<1x128xf32, #tpu.memory_space<vmem>>, %arg16: memref<128x128xbf16, #tpu.memory_space<vmem>>, %arg17: memref<1x128xf32, #tpu.memory_space<vmem>>, %arg18: memref<8x384xf32, #tpu.memory_space<vmem>>) attributes {dimension_semantics = [#tpu.dimension_semantics<parallel>], iteration_bounds = array<i64: 1>, scalar_prefetch = 0 : i64, scratch_operands = 0 : i64, tpu.core_type = #tpu.core_type<tc>, window_params = [{transform_indices = @transform_0, window_bounds = array<i64: 8, 3>}, {pipeline_mode = #tpu.pipeline_mode<synchronous>, transform_indices = @transform_1, window_bounds = array<i64: 128, 384>}, {pipeline_mode = #tpu.pipeline_mode<synchronous>, transform_indices = @transform_2, window_bounds = array<i64: 1, 128>}, {pipeline_mode = #tpu.pipeline_mode<synchronous>, transform_indices = @transform_3, window_bounds = array<i64: 128, 128>}, {pipeline_mode = #tpu.pipeline_mode<synchronous>, transform_indices = @transform_4, window_bounds = array<i64: 1, 128>}, {pipeline_mode = #tpu.pipeline_mode<synchronous>, transform_indices = @transform_5, window_bounds = array<i64: 128, 128>}, {pipeline_mode = #tpu.pipeline_mode<synchronous>, transform_indices = @transform_6, window_bounds = array<i64: 1, 128>}, {pipeline_mode = #tpu.pipeline_mode<synchronous>, transform_indices = @transform_7, window_bounds = array<i64: 128, 128>}, {pipeline_mode = #tpu.pipeline_mode<synchronous>, transform_indices = @transform_8, window_bounds = array<i64: 1, 128>}, {pipeline_mode = #tpu.pipeline_mode<synchronous>, transform_indices = @transform_9, window_bounds = array<i64: 128, 128>}, {pipeline_mode = #tpu.pipeline_mode<synchronous>, transform_indices = @transform_10, window_bounds = array<i64: 1, 128>}, {pipeline_mode = #tpu.pipeline_mode<synchronous>, transform_indices = @transform_11, window_bounds = array<i64: 128, 128>}, {pipeline_mode = #tpu.pipeline_mode<synchronous>, transform_indices = @transform_12, window_bounds = array<i64: 1, 128>}, {pipeline_mode = #tpu.pipeline_mode<synchronous>, transform_indices = @transform_13, window_bounds = array<i64: 128, 128>}, {pipeline_mode = #tpu.pipeline_mode<synchronous>, transform_indices = @transform_14, window_bounds = array<i64: 1, 128>}, {pipeline_mode = #tpu.pipeline_mode<synchronous>, transform_indices = @transform_15, window_bounds = array<i64: 128, 128>}, {pipeline_mode = #tpu.pipeline_mode<synchronous>, transform_indices = @transform_16, window_bounds = array<i64: 1, 128>}, {transform_indices = @transform_17, window_bounds = array<i64: 8, 384>}]} {
    %0 = tpu.iota {dimensions = array<i32: 1>} : vector<8x128xi32>
    %c0 = arith.constant 0 : index
    %c0_0 = arith.constant 0 : index
    %1 = vector.load %arg1[%c0, %c0_0] : memref<8x3xi32, #tpu.memory_space<vmem>>, vector<8x1xi32>
    %c0_i32 = arith.constant 0 : i32
    %2 = vector.broadcast %c0_i32 : i32 to vector<8x1xi32>
    %3 = arith.addi %1, %2 : vector<8x1xi32>
    %4 = vector.broadcast %3 : vector<8x1xi32> to vector<8x128xi32>
    %5 = arith.cmpi eq, %0, %4 : vector<8x128xi32>
    %c0_1 = arith.constant 0 : index
    %c1 = arith.constant 1 : index
    %6 = vector.load %arg1[%c0_1, %c1] : memref<8x3xi32, #tpu.memory_space<vmem>>, vector<8x1xi32>
    %c11_i32 = arith.constant 11 : i32
    %7 = vector.broadcast %c11_i32 : i32 to vector<8x1xi32>
    %8 = arith.addi %6, %7 : vector<8x1xi32>
    %9 = vector.broadcast %8 : vector<8x1xi32> to vector<8x128xi32>
    %10 = arith.cmpi eq, %0, %9 : vector<8x128xi32>
    %11 = arith.ori %5, %10 : vector<8x128xi1>
    %c0_2 = arith.constant 0 : index
    %c2 = arith.constant 2 : index
    %12 = vector.load %arg1[%c0_2, %c2] : memref<8x3xi32, #tpu.memory_space<vmem>>, vector<8x1xi32>
    %c18_i32 = arith.constant 18 : i32
    %13 = vector.broadcast %c18_i32 : i32 to vector<8x1xi32>
    %14 = arith.addi %12, %13 : vector<8x1xi32>
    %15 = vector.broadcast %14 : vector<8x1xi32> to vector<8x128xi32>
    %16 = arith.cmpi eq, %0, %15 : vector<8x128xi32>
    %17 = arith.ori %11, %16 : vector<8x128xi1>
    %18 = arith.extui %17 : vector<8x128xi1> to vector<8x128xi32>
    %19 = arith.sitofp %18 : vector<8x128xi32> to vector<8x128xf32>
    %20 = arith.truncf %19 : vector<8x128xf32> to vector<8x128xbf16>
    %c0_3 = arith.constant 0 : index
    %c0_4 = arith.constant 0 : index
    %21 = vector.load %arg2[%c0_3, %c0_4] : memref<128x384xbf16, #tpu.memory_space<vmem>>, vector<128x384xbf16>
    %cst = arith.constant dense<0.000000e+00> : vector<8x384xf32>
    %22 = tpu.matmul %20, %21, %cst {dimension_numbers = #tpu.dot_dimension_numbers<[1], [0], [0], [1], [0, 0, 1, 1], [], []>} : vector<8x128xbf16>, vector<128x384xbf16>, vector<8x384xf32> -> vector<8x384xf32>
    %23 = vector.extract_strided_slice %22 {offsets = [0, 0], sizes = [8, 128], strides = [1, 1]} : vector<8x384xf32> to vector<8x128xf32>
    %c0_5 = arith.constant 0 : index
    %c0_6 = arith.constant 0 : index
    %24 = vector.load %arg3[%c0_5, %c0_6] : memref<1x128xf32, #tpu.memory_space<vmem>>, vector<1x128xf32>
    %25 = vector.broadcast %24 : vector<1x128xf32> to vector<8x128xf32>
    %26 = arith.addf %23, %25 : vector<8x128xf32>
    %cst_7 = arith.constant 0.000000e+00 : f32
    %27 = vector.broadcast %cst_7 : f32 to vector<8x128xf32>
    %28 = arith.maximumf %26, %27 : vector<8x128xf32>
    %29 = arith.truncf %28 : vector<8x128xf32> to vector<8x128xbf16>
    %c0_8 = arith.constant 0 : index
    %c0_9 = arith.constant 0 : index
    %30 = vector.load %arg4[%c0_8, %c0_9] : memref<128x128xbf16, #tpu.memory_space<vmem>>, vector<128x128xbf16>
    %cst_10 = arith.constant dense<0.000000e+00> : vector<8x128xf32>
    %31 = tpu.matmul %29, %30, %cst_10 {dimension_numbers = #tpu.dot_dimension_numbers<[1], [0], [0], [1], [0, 0, 1, 1], [], []>} : vector<8x128xbf16>, vector<128x128xbf16>, vector<8x128xf32> -> vector<8x128xf32>
    %c0_11 = arith.constant 0 : index
    %c0_12 = arith.constant 0 : index
    %32 = vector.load %arg5[%c0_11, %c0_12] : memref<1x128xf32, #tpu.memory_space<vmem>>, vector<1x128xf32>
    %33 = vector.broadcast %32 : vector<1x128xf32> to vector<8x128xf32>
    %34 = arith.addf %31, %33 : vector<8x128xf32>
    %cst_13 = arith.constant 0.000000e+00 : f32
    %35 = vector.broadcast %cst_13 : f32 to vector<8x128xf32>
    %36 = arith.maximumf %34, %35 : vector<8x128xf32>
    %37 = arith.truncf %36 : vector<8x128xf32> to vector<8x128xbf16>
    %c0_14 = arith.constant 0 : index
    %c0_15 = arith.constant 0 : index
    %38 = vector.load %arg6[%c0_14, %c0_15] : memref<128x128xbf16, #tpu.memory_space<vmem>>, vector<128x128xbf16>
    %cst_16 = arith.constant dense<0.000000e+00> : vector<8x128xf32>
    %39 = tpu.matmul %37, %38, %cst_16 {dimension_numbers = #tpu.dot_dimension_numbers<[1], [0], [0], [1], [0, 0, 1, 1], [], []>} : vector<8x128xbf16>, vector<128x128xbf16>, vector<8x128xf32> -> vector<8x128xf32>
    %c0_17 = arith.constant 0 : index
    %c0_18 = arith.constant 0 : index
    %40 = vector.load %arg7[%c0_17, %c0_18] : memref<1x128xf32, #tpu.memory_space<vmem>>, vector<1x128xf32>
    %41 = vector.broadcast %40 : vector<1x128xf32> to vector<8x128xf32>
    %42 = arith.addf %39, %41 : vector<8x128xf32>
    %43 = vector.extract_strided_slice %22 {offsets = [0, 128], sizes = [8, 128], strides = [1, 1]} : vector<8x384xf32> to vector<8x128xf32>
    %c0_19 = arith.constant 0 : index
    %c0_20 = arith.constant 0 : index
    %44 = vector.load %arg8[%c0_19, %c0_20] : memref<128x128xbf16, #tpu.memory_space<vmem>>, vector<128x128xbf16>
    %cst_21 = arith.constant dense<0.000000e+00> : vector<8x128xf32>
    %45 = tpu.matmul %37, %44, %cst_21 {dimension_numbers = #tpu.dot_dimension_numbers<[1], [0], [0], [1], [0, 0, 1, 1], [], []>} : vector<8x128xbf16>, vector<128x128xbf16>, vector<8x128xf32> -> vector<8x128xf32>
    %46 = arith.addf %43, %45 : vector<8x128xf32>
    %c0_22 = arith.constant 0 : index
    %c0_23 = arith.constant 0 : index
    %47 = vector.load %arg9[%c0_22, %c0_23] : memref<1x128xf32, #tpu.memory_space<vmem>>, vector<1x128xf32>
    %48 = vector.broadcast %47 : vector<1x128xf32> to vector<8x128xf32>
    %49 = arith.addf %46, %48 : vector<8x128xf32>
    %cst_24 = arith.constant 0.000000e+00 : f32
    %50 = vector.broadcast %cst_24 : f32 to vector<8x128xf32>
    %51 = arith.maximumf %49, %50 : vector<8x128xf32>
    %52 = arith.truncf %51 : vector<8x128xf32> to vector<8x128xbf16>
    %c0_25 = arith.constant 0 : index
    %c0_26 = arith.constant 0 : index
    %53 = vector.load %arg10[%c0_25, %c0_26] : memref<128x128xbf16, #tpu.memory_space<vmem>>, vector<128x128xbf16>
    %cst_27 = arith.constant dense<0.000000e+00> : vector<8x128xf32>
    %54 = tpu.matmul %52, %53, %cst_27 {dimension_numbers = #tpu.dot_dimension_numbers<[1], [0], [0], [1], [0, 0, 1, 1], [], []>} : vector<8x128xbf16>, vector<128x128xbf16>, vector<8x128xf32> -> vector<8x128xf32>
    %c0_28 = arith.constant 0 : index
    %c0_29 = arith.constant 0 : index
    %55 = vector.load %arg11[%c0_28, %c0_29] : memref<1x128xf32, #tpu.memory_space<vmem>>, vector<1x128xf32>
    %56 = vector.broadcast %55 : vector<1x128xf32> to vector<8x128xf32>
    %57 = arith.addf %54, %56 : vector<8x128xf32>
    %58 = vector.extract_strided_slice %22 {offsets = [0, 256], sizes = [8, 128], strides = [1, 1]} : vector<8x384xf32> to vector<8x128xf32>
    %c0_30 = arith.constant 0 : index
    %c0_31 = arith.constant 0 : index
    %59 = vector.load %arg12[%c0_30, %c0_31] : memref<128x128xbf16, #tpu.memory_space<vmem>>, vector<128x128xbf16>
    %cst_32 = arith.constant dense<0.000000e+00> : vector<8x128xf32>
    %60 = tpu.matmul %52, %59, %cst_32 {dimension_numbers = #tpu.dot_dimension_numbers<[1], [0], [0], [1], [0, 0, 1, 1], [], []>} : vector<8x128xbf16>, vector<128x128xbf16>, vector<8x128xf32> -> vector<8x128xf32>
    %61 = arith.addf %58, %60 : vector<8x128xf32>
    %c0_33 = arith.constant 0 : index
    %c0_34 = arith.constant 0 : index
    %62 = vector.load %arg13[%c0_33, %c0_34] : memref<1x128xf32, #tpu.memory_space<vmem>>, vector<1x128xf32>
    %63 = vector.broadcast %62 : vector<1x128xf32> to vector<8x128xf32>
    %64 = arith.addf %61, %63 : vector<8x128xf32>
    %cst_35 = arith.constant 0.000000e+00 : f32
    %65 = vector.broadcast %cst_35 : f32 to vector<8x128xf32>
    %66 = arith.maximumf %64, %65 : vector<8x128xf32>
    %67 = arith.truncf %66 : vector<8x128xf32> to vector<8x128xbf16>
    %c0_36 = arith.constant 0 : index
    %c0_37 = arith.constant 0 : index
    %68 = vector.load %arg14[%c0_36, %c0_37] : memref<128x128xbf16, #tpu.memory_space<vmem>>, vector<128x128xbf16>
    %cst_38 = arith.constant dense<0.000000e+00> : vector<8x128xf32>
    %69 = tpu.matmul %67, %68, %cst_38 {dimension_numbers = #tpu.dot_dimension_numbers<[1], [0], [0], [1], [0, 0, 1, 1], [], []>} : vector<8x128xbf16>, vector<128x128xbf16>, vector<8x128xf32> -> vector<8x128xf32>
    %c0_39 = arith.constant 0 : index
    %c0_40 = arith.constant 0 : index
    %70 = vector.load %arg15[%c0_39, %c0_40] : memref<1x128xf32, #tpu.memory_space<vmem>>, vector<1x128xf32>
    %71 = vector.broadcast %70 : vector<1x128xf32> to vector<8x128xf32>
    %72 = arith.addf %69, %71 : vector<8x128xf32>
    %cst_41 = arith.constant 0.000000e+00 : f32
    %73 = vector.broadcast %cst_41 : f32 to vector<8x128xf32>
    %74 = arith.maximumf %72, %73 : vector<8x128xf32>
    %75 = arith.truncf %74 : vector<8x128xf32> to vector<8x128xbf16>
    %c0_42 = arith.constant 0 : index
    %c0_43 = arith.constant 0 : index
    %76 = vector.load %arg16[%c0_42, %c0_43] : memref<128x128xbf16, #tpu.memory_space<vmem>>, vector<128x128xbf16>
    %cst_44 = arith.constant dense<0.000000e+00> : vector<8x128xf32>
    %77 = tpu.matmul %75, %76, %cst_44 {dimension_numbers = #tpu.dot_dimension_numbers<[1], [0], [0], [1], [0, 0, 1, 1], [], []>} : vector<8x128xbf16>, vector<128x128xbf16>, vector<8x128xf32> -> vector<8x128xf32>
    %c0_45 = arith.constant 0 : index
    %c0_46 = arith.constant 0 : index
    %78 = vector.load %arg17[%c0_45, %c0_46] : memref<1x128xf32, #tpu.memory_space<vmem>>, vector<1x128xf32>
    %79 = vector.broadcast %78 : vector<1x128xf32> to vector<8x128xf32>
    %80 = arith.addf %77, %79 : vector<8x128xf32>
    %81 = tpu.concatenate %42, %57, %80 in 1 : vector<8x128xf32>, vector<8x128xf32>, vector<8x128xf32> -> vector<8x384xf32>
    %c0_47 = arith.constant 0 : index
    %c0_48 = arith.constant 0 : index
    %82 = vector.load %arg18[%c0_47, %c0_48] : memref<8x384xf32, #tpu.memory_space<vmem>>, vector<8x384xf32>
    tpu.vector_store %arg18[%c0_47, %c0_48], %81 {strides = array<i32>} : memref<8x384xf32, #tpu.memory_space<vmem>>, vector<8x384xf32>,
    return
  }
  func.func @transform_0(%arg0: i32) -> (i32, i32) {
    %c0_i32 = arith.constant 0 : i32
    %c0_i32_0 = arith.constant 0 : i32
    return %arg0, %c0_i32 : i32, i32
  }
  func.func @transform_1(%arg0: i32) -> (i32, i32) {
    %c0_i32 = arith.constant 0 : i32
    %c0_i32_0 = arith.constant 0 : i32
    %c0_i32_1 = arith.constant 0 : i32
    return %c0_i32, %c0_i32_0 : i32, i32
  }
  func.func @transform_2(%arg0: i32) -> (i32, i32) {
    %c0_i32 = arith.constant 0 : i32
    %c0_i32_0 = arith.constant 0 : i32
    %c0_i32_1 = arith.constant 0 : i32
    return %c0_i32, %c0_i32_0 : i32, i32
  }
  func.func @transform_3(%arg0: i32) -> (i32, i32) {
    %c0_i32 = arith.constant 0 : i32
    %c0_i32_0 = arith.constant 0 : i32
    %c0_i32_1 = arith.constant 0 : i32
    return %c0_i32, %c0_i32_0 : i32, i32
  }
  func.func @transform_4(%arg0: i32) -> (i32, i32) {
    %c0_i32 = arith.constant 0 : i32
    %c0_i32_0 = arith.constant 0 : i32
    %c0_i32_1 = arith.constant 0 : i32
    return %c0_i32, %c0_i32_0 : i32, i32
  }
  func.func @transform_5(%arg0: i32) -> (i32, i32) {
    %c0_i32 = arith.constant 0 : i32
    %c0_i32_0 = arith.constant 0 : i32
    %c0_i32_1 = arith.constant 0 : i32
    return %c0_i32, %c0_i32_0 : i32, i32
  }
  func.func @transform_6(%arg0: i32) -> (i32, i32) {
    %c0_i32 = arith.constant 0 : i32
    %c0_i32_0 = arith.constant 0 : i32
    %c0_i32_1 = arith.constant 0 : i32
    return %c0_i32, %c0_i32_0 : i32, i32
  }
  func.func @transform_7(%arg0: i32) -> (i32, i32) {
    %c0_i32 = arith.constant 0 : i32
    %c0_i32_0 = arith.constant 0 : i32
    %c0_i32_1 = arith.constant 0 : i32
    return %c0_i32, %c0_i32_0 : i32, i32
  }
  func.func @transform_8(%arg0: i32) -> (i32, i32) {
    %c0_i32 = arith.constant 0 : i32
    %c0_i32_0 = arith.constant 0 : i32
    %c0_i32_1 = arith.constant 0 : i32
    return %c0_i32, %c0_i32_0 : i32, i32
  }
  func.func @transform_9(%arg0: i32) -> (i32, i32) {
    %c0_i32 = arith.constant 0 : i32
    %c0_i32_0 = arith.constant 0 : i32
    %c0_i32_1 = arith.constant 0 : i32
    return %c0_i32, %c0_i32_0 : i32, i32
  }
  func.func @transform_10(%arg0: i32) -> (i32, i32) {
    %c0_i32 = arith.constant 0 : i32
    %c0_i32_0 = arith.constant 0 : i32
    %c0_i32_1 = arith.constant 0 : i32
    return %c0_i32, %c0_i32_0 : i32, i32
  }
  func.func @transform_11(%arg0: i32) -> (i32, i32) {
    %c0_i32 = arith.constant 0 : i32
    %c0_i32_0 = arith.constant 0 : i32
    %c0_i32_1 = arith.constant 0 : i32
    return %c0_i32, %c0_i32_0 : i32, i32
  }
  func.func @transform_12(%arg0: i32) -> (i32, i32) {
    %c0_i32 = arith.constant 0 : i32
    %c0_i32_0 = arith.constant 0 : i32
    %c0_i32_1 = arith.constant 0 : i32
    return %c0_i32, %c0_i32_0 : i32, i32
  }
  func.func @transform_13(%arg0: i32) -> (i32, i32) {
    %c0_i32 = arith.constant 0 : i32
    %c0_i32_0 = arith.constant 0 : i32
    %c0_i32_1 = arith.constant 0 : i32
    return %c0_i32, %c0_i32_0 : i32, i32
  }
  func.func @transform_14(%arg0: i32) -> (i32, i32) {
    %c0_i32 = arith.constant 0 : i32
    %c0_i32_0 = arith.constant 0 : i32
    %c0_i32_1 = arith.constant 0 : i32
    return %c0_i32, %c0_i32_0 : i32, i32
  }
  func.func @transform_15(%arg0: i32) -> (i32, i32) {
    %c0_i32 = arith.constant 0 : i32
    %c0_i32_0 = arith.constant 0 : i32
    %c0_i32_1 = arith.constant 0 : i32
    return %c0_i32, %c0_i32_0 : i32, i32
  }
  func.func @transform_16(%arg0: i32) -> (i32, i32) {
    %c0_i32 = arith.constant 0 : i32
    %c0_i32_0 = arith.constant 0 : i32
    %c0_i32_1 = arith.constant 0 : i32
    return %c0_i32, %c0_i32_0 : i32, i32
  }
  func.func @transform_17(%arg0: i32) -> (i32, i32) {
    %c0_i32 = arith.constant 0 : i32
    %c0_i32_0 = arith.constant 0 : i32
    return %arg0, %c0_i32 : i32, i32
  }
}

</mosaic_0001>

<llo_original>
// kernel: tpu_custom_call.1
$region0: #{tpu_custom_call.1}
  #allocation0 [shape = 'u32[]', space=smem, size = 0x4, offset = 0x4, fixed_abs, tag = 'smem constant byte address 0x4 - core index']
  #allocation1 [shape = 'u32[144,128]{1,0:T(1,128)}', space=vmem, size = 0x12000, scoped, tag = 'internal scratch']
  %s0 = inlined_call_operand.vmem [shape: s32[8,3], index: 0, kind: input, shape index: {}]
  %s1 = inlined_call_operand.hbm [shape: bf16[128,384], index: 1, kind: input, shape index: {}]
  %s2 = inlined_call_operand.vmem [shape: f32[1,128], index: 2, kind: input, shape index: {}]
  %s3 = inlined_call_operand.hbm [shape: bf16[128,128], index: 3, kind: input, shape index: {}]
  %s4 = inlined_call_operand.vmem [shape: f32[1,128], index: 4, kind: input, shape index: {}]
  %s5 = inlined_call_operand.hbm [shape: bf16[128,128], index: 5, kind: input, shape index: {}]
  %s6 = inlined_call_operand.vmem [shape: f32[1,128], index: 6, kind: input, shape index: {}]
  %s7 = inlined_call_operand.hbm [shape: bf16[128,128], index: 7, kind: input, shape index: {}]
  %s8 = inlined_call_operand.vmem [shape: f32[1,128], index: 8, kind: input, shape index: {}]
  %s9 = inlined_call_operand.hbm [shape: bf16[128,128], index: 9, kind: input, shape index: {}]
  %s10 = inlined_call_operand.hbm [shape: f32[1,128], index: 10, kind: input, shape index: {}]
  %s11 = inlined_call_operand.hbm [shape: bf16[128,128], index: 11, kind: input, shape index: {}]
  %s12 = inlined_call_operand.hbm [shape: f32[1,128], index: 12, kind: input, shape index: {}]
  %s13 = inlined_call_operand.hbm [shape: bf16[128,128], index: 13, kind: input, shape index: {}]
  %s14 = inlined_call_operand.hbm [shape: f32[1,128], index: 14, kind: input, shape index: {}]
  %s15 = inlined_call_operand.vmem [shape: bf16[128,128], index: 15, kind: input, shape index: {}]
  %s16 = inlined_call_operand.vmem [shape: f32[1,128], index: 16, kind: input, shape index: {}]
  %s17 = inlined_call_operand.hbm [shape: f32[8,384], index: 17, kind: output, shape index: {}]
  %s18 = sld [smem:[#allocation0]]
  $region118: #{tpu_custom_call.1} parent=0
    _
  %s20 = ssub.s32 1, %s18
  %s21 = scalar_select 0, %s20, %s18
  $region1: #{tpu_custom_call.1} parent=0
    #allocation2 [shape = 'u8[98304]{0}', space=vmem, size = 0x18000, scoped, tag = 'input window, operand 1, single buffered']
    #allocation3 [shape = 's32[1]{0}', space=sflag, size = 0x4, scoped, tag = 'scoped memory for tpu_custom_call.1']
    #allocation4 [shape = 's32[1]{0}', space=sflag, size = 0x4, scoped, tag = 'scoped memory for tpu_custom_call.1']
    #allocation5 [shape = 'u8[32768]{0}', space=vmem, size = 0x8000, scoped, tag = 'input window, operand 3, single buffered']
    #allocation6 [shape = 's32[1]{0}', space=sflag, size = 0x4, scoped, tag = 'scoped memory for tpu_custom_call.1']
    #allocation7 [shape = 'u8[32768]{0}', space=vmem, size = 0x8000, scoped, tag = 'input window, operand 5, single buffered']
    #allocation8 [shape = 'u8[32768]{0}', space=vmem, size = 0x8000, scoped, tag = 'input window, operand 7, single buffered']
    #allocation9 [shape = 's32[1]{0}', space=sflag, size = 0x4, scoped, tag = 'scoped memory for tpu_custom_call.1']
    #allocation10 [shape = 'u8[32768]{0}', space=vmem, size = 0x8000, scoped, tag = 'input window, operand 9, single buffered']
    #allocation11 [shape = 'u8[512]{0}', space=vmem, size = 0x400, scoped, tag = 'input window, operand 10, single buffered']
    #allocation12 [shape = 's32[1]{0}', space=sflag, size = 0x4, scoped, tag = 'scoped memory for tpu_custom_call.1']
    #allocation13 [shape = 'u8[32768]{0}', space=vmem, size = 0x8000, scoped, tag = 'input window, operand 11, single buffered']
    #allocation14 [shape = 'u8[512]{0}', space=vmem, size = 0x400, scoped, tag = 'input window, operand 12, single buffered']
    #allocation15 [shape = 's32[1]{0}', space=sflag, size = 0x4, scoped, tag = 'scoped memory for tpu_custom_call.1']
    #allocation16 [shape = 'u8[32768]{0}', space=vmem, size = 0x8000, scoped, tag = 'input window, operand 13, single buffered']
    #allocation17 [shape = 'u8[512]{0}', space=vmem, size = 0x400, scoped, tag = 'input window, operand 14, single buffered']
    #allocation18 [shape = 's32[1]{0}', space=sflag, size = 0x4, scoped, tag = 'scoped memory for tpu_custom_call.1']
    #allocation19 [shape = 'u8[12288]{0}', space=vmem, size = 0x3000, scoped, tag = 'output window, operand 0, single buffered']
    %22 = vsyncpa [#allocation3], 0
    %23 = vsyncpa [#allocation6], 0
    %24 = vsyncpa [#allocation9], 0
    %25 = vsyncpa [#allocation12], 0
    %26 = vsyncpa [#allocation15], 0
    %27 = vsyncpa [#allocation18], 0
    %28 = vsyncpa [#allocation4], 0
    // Predicated region
    $region2: #{tpu_custom_call.1} parent=1 // pred_check
      _
    $region3: #{tpu_custom_call.1} parent=1 // pred_check_branch
      %30 = sbr.rel (0) target = $region5
    $region4: #{tpu_custom_call.1} parent=1 // pred_region
      _
    $region5: #{tpu_custom_call.1} parent=1 // pred_fallthru
      _
    // Predicated region
    $region6: #{tpu_custom_call.1} parent=1 // pred_check
      _
    $region7: #{tpu_custom_call.1} parent=1 // pred_check_branch
      %32 = sbr.rel (0) target = $region9
    $region8: #{tpu_custom_call.1} parent=1 // pred_region
      %s34 = ssub.s32 3072, 3072
      %35 = vsyncadd [#allocation3], %s34
      %s36 = sshll.u32 [#allocation2], 4
      %s37 = int_to_ptr.vmem [resolvable:$true] %s36
      %42 = dma.hbm_to_vmem [thread:$0]  %s1, 3072, %s37, [#allocation3], 192, 192, 12
    $region9: #{tpu_custom_call.1} parent=1 // pred_fallthru
      _
    // Predicated region
    $region10: #{tpu_custom_call.1} parent=1 // pred_check
      _
    $region11: #{tpu_custom_call.1} parent=1 // pred_check_branch
      %44 = sbr.rel (0) target = $region13
    $region12: #{tpu_custom_call.1} parent=1 // pred_region
      _
    $region13: #{tpu_custom_call.1} parent=1 // pred_fallthru
      _
    // Predicated region
    $region14: #{tpu_custom_call.1} parent=1 // pred_check
      _
    $region15: #{tpu_custom_call.1} parent=1 // pred_check_branch
      %46 = sbr.rel (0) target = $region17
    $region16: #{tpu_custom_call.1} parent=1 // pred_region
      %s48 = ssub.s32 1024, 1024
      %49 = vsyncadd [#allocation6], %s48
      %s50 = sshll.u32 [#allocation5], 4
      %s51 = int_to_ptr.vmem [resolvable:$true] %s50
      %56 = dma.hbm_to_vmem [thread:$0]  %s3, 1024, %s51, [#allocation6], 64, 64, 4
    $region17: #{tpu_custom_call.1} parent=1 // pred_fallthru
      _
    // Predicated region
    $region18: #{tpu_custom_call.1} parent=1 // pred_check
      _
    $region19: #{tpu_custom_call.1} parent=1 // pred_check_branch
      %58 = sbr.rel (0) target = $region21
    $region20: #{tpu_custom_call.1} parent=1 // pred_region
      _
    $region21: #{tpu_custom_call.1} parent=1 // pred_fallthru
      _
    // Predicated region
    $region22: #{tpu_custom_call.1} parent=1 // pred_check
      _
    $region23: #{tpu_custom_call.1} parent=1 // pred_check_branch
      %60 = sbr.rel (0) target = $region25
    $region24: #{tpu_custom_call.1} parent=1 // pred_region
      %s62 = ssub.s32 1024, 1024
      %63 = vsyncadd [#allocation6], %s62
      %s64 = sshll.u32 [#allocation7], 4
      %s65 = int_to_ptr.vmem [resolvable:$true] %s64
      %70 = dma.hbm_to_vmem [thread:$0]  %s5, 1024, %s65, [#allocation6], 64, 64, 4
    $region25: #{tpu_custom_call.1} parent=1 // pred_fallthru
      _
    // Predicated region
    $region26: #{tpu_custom_call.1} parent=1 // pred_check
      _
    $region27: #{tpu_custom_call.1} parent=1 // pred_check_branch
      %72 = sbr.rel (0) target = $region29
    $region28: #{tpu_custom_call.1} parent=1 // pred_region
      _
    $region29: #{tpu_custom_call.1} parent=1 // pred_fallthru
      _
    // Predicated region
    $region30: #{tpu_custom_call.1} parent=1 // pred_check
      _
    $region31: #{tpu_custom_call.1} parent=1 // pred_check_branch
      %74 = sbr.rel (0) target = $region33
    $region32: #{tpu_custom_call.1} parent=1 // pred_region
      %s76 = ssub.s32 1024, 1024
      %77 = vsyncadd [#allocation9], %s76
      %s78 = sshll.u32 [#allocation8], 4
      %s79 = int_to_ptr.vmem [resolvable:$true] %s78
      %84 = dma.hbm_to_vmem [thread:$0]  %s7, 1024, %s79, [#allocation9], 64, 64, 4
    $region33: #{tpu_custom_call.1} parent=1 // pred_fallthru
      _
    // Predicated region
    $region34: #{tpu_custom_call.1} parent=1 // pred_check
      _
    $region35: #{tpu_custom_call.1} parent=1 // pred_check_branch
      %86 = sbr.rel (0) target = $region37
    $region36: #{tpu_custom_call.1} parent=1 // pred_region
      _
    $region37: #{tpu_custom_call.1} parent=1 // pred_fallthru
      _
    // Predicated region
    $region38: #{tpu_custom_call.1} parent=1 // pred_check
      _
    $region39: #{tpu_custom_call.1} parent=1 // pred_check_branch
      %88 = sbr.rel (0) target = $region41
    $region40: #{tpu_custom_call.1} parent=1 // pred_region
      %s90 = ssub.s32 1024, 1024
      %91 = vsyncadd [#allocation9], %s90
      %s92 = sshll.u32 [#allocation10], 4
      %s93 = int_to_ptr.vmem [resolvable:$true] %s92
      %98 = dma.hbm_to_vmem [thread:$0]  %s9, 1024, %s93, [#allocation9], 64, 64, 4
    $region41: #{tpu_custom_call.1} parent=1 // pred_fallthru
      _
    // Predicated region
    $region42: #{tpu_custom_call.1} parent=1 // pred_check
      _
    $region43: #{tpu_custom_call.1} parent=1 // pred_check_branch
      %100 = sbr.rel (0) target = $region45
    $region44: #{tpu_custom_call.1} parent=1 // pred_region
      %s102 = ssub.s32 16, 16
      %103 = vsyncadd [#allocation12], %s102
      %s105 = sshll.u32 [#allocation11], 4
      %s106 = int_to_ptr.vmem [resolvable:$true] %s105
      %108 = dma.hbm_to_vmem [thread:$0]  %s10, 16, %s106, [#allocation12]
    $region45: #{tpu_custom_call.1} parent=1 // pred_fallthru
      _
    // Predicated region
    $region46: #{tpu_custom_call.1} parent=1 // pred_check
      _
    $region47: #{tpu_custom_call.1} parent=1 // pred_check_branch
      %110 = sbr.rel (0) target = $region49
    $region48: #{tpu_custom_call.1} parent=1 // pred_region
      %s112 = ssub.s32 1024, 1024
      %113 = vsyncadd [#allocation12], %s112
      %s114 = sshll.u32 [#allocation13], 4
      %s115 = int_to_ptr.vmem [resolvable:$true] %s114
      %120 = dma.hbm_to_vmem [thread:$0]  %s11, 1024, %s115, [#allocation12], 64, 64, 4
    $region49: #{tpu_custom_call.1} parent=1 // pred_fallthru
      _
    // Predicated region
    $region50: #{tpu_custom_call.1} parent=1 // pred_check
      _
    $region51: #{tpu_custom_call.1} parent=1 // pred_check_branch
      %122 = sbr.rel (0) target = $region53
    $region52: #{tpu_custom_call.1} parent=1 // pred_region
      %s124 = ssub.s32 16, 16
      %125 = vsyncadd [#allocation15], %s124
      %s127 = sshll.u32 [#allocation14], 4
      %s128 = int_to_ptr.vmem [resolvable:$true] %s127
      %130 = dma.hbm_to_vmem [thread:$0]  %s12, 16, %s128, [#allocation15]
    $region53: #{tpu_custom_call.1} parent=1 // pred_fallthru
      _
    // Predicated region
    $region54: #{tpu_custom_call.1} parent=1 // pred_check
      _
    $region55: #{tpu_custom_call.1} parent=1 // pred_check_branch
      %132 = sbr.rel (0) target = $region57
    $region56: #{tpu_custom_call.1} parent=1 // pred_region
      %s134 = ssub.s32 1024, 1024
      %135 = vsyncadd [#allocation15], %s134
      %s136 = sshll.u32 [#allocation16], 4
      %s137 = int_to_ptr.vmem [resolvable:$true] %s136
      %142 = dma.hbm_to_vmem [thread:$0]  %s13, 1024, %s137, [#allocation15], 64, 64, 4
    $region57: #{tpu_custom_call.1} parent=1 // pred_fallthru
      _
    // Predicated region
    $region58: #{tpu_custom_call.1} parent=1 // pred_check
      _
    $region59: #{tpu_custom_call.1} parent=1 // pred_check_branch
      %144 = sbr.rel (0) target = $region61
    $region60: #{tpu_custom_call.1} parent=1 // pred_region
      %s146 = ssub.s32 16, 16
      %147 = vsyncadd [#allocation18], %s146
      %s149 = sshll.u32 [#allocation17], 4
      %s150 = int_to_ptr.vmem [resolvable:$true] %s149
      %152 = dma.hbm_to_vmem [thread:$0]  %s14, 16, %s150, [#allocation18]
    $region61: #{tpu_custom_call.1} parent=1 // pred_fallthru
      _
    // Predicated region
    $region62: #{tpu_custom_call.1} parent=1 // pred_check
      _
    $region63: #{tpu_custom_call.1} parent=1 // pred_check_branch
      %154 = sbr.rel (0) target = $region65
    $region64: #{tpu_custom_call.1} parent=1 // pred_region
      _
    $region65: #{tpu_custom_call.1} parent=1 // pred_fallthru
      _
    // Predicated region
    $region66: #{tpu_custom_call.1} parent=1 // pred_check
      _
    $region67: #{tpu_custom_call.1} parent=1 // pred_check_branch
      %156 = sbr.rel (0) target = $region69
    $region68: #{tpu_custom_call.1} parent=1 // pred_region
      _
    $region69: #{tpu_custom_call.1} parent=1 // pred_fallthru
      _
    // Predicated region
    $region70: #{tpu_custom_call.1} parent=1 // pred_check
      _
    $region71: #{tpu_custom_call.1} parent=1 // pred_check_branch
      %158 = sbr.rel (0) target = $region73
    $region72: #{tpu_custom_call.1} parent=1 // pred_region
      %159 = dma.done [#allocation3], 3072
    $region73: #{tpu_custom_call.1} parent=1 // pred_fallthru
      _
    // Predicated region
    $region74: #{tpu_custom_call.1} parent=1 // pred_check
      _
    $region75: #{tpu_custom_call.1} parent=1 // pred_check_branch
      %161 = sbr.rel (0) target = $region77
    $region76: #{tpu_custom_call.1} parent=1 // pred_region
      %162 = dma.done [#allocation6], 1024
    $region77: #{tpu_custom_call.1} parent=1 // pred_fallthru
      _
    // Predicated region
    $region78: #{tpu_custom_call.1} parent=1 // pred_check
      _
    $region79: #{tpu_custom_call.1} parent=1 // pred_check_branch
      %164 = sbr.rel (0) target = $region81
    $region80: #{tpu_custom_call.1} parent=1 // pred_region
      %165 = dma.done [#allocation6], 1024
    $region81: #{tpu_custom_call.1} parent=1 // pred_fallthru
      _
    // Predicated region
    $region82: #{tpu_custom_call.1} parent=1 // pred_check
      _
    $region83: #{tpu_custom_call.1} parent=1 // pred_check_branch
      %167 = sbr.rel (0) target = $region85
    $region84: #{tpu_custom_call.1} parent=1 // pred_region
      %168 = dma.done [#allocation9], 1024
    $region85: #{tpu_custom_call.1} parent=1 // pred_fallthru
      _
    // Predicated region
    $region86: #{tpu_custom_call.1} parent=1 // pred_check
      _
    $region87: #{tpu_custom_call.1} parent=1 // pred_check_branch
      %170 = sbr.rel (0) target = $region89
    $region88: #{tpu_custom_call.1} parent=1 // pred_region
      %171 = dma.done [#allocation9], 1024
    $region89: #{tpu_custom_call.1} parent=1 // pred_fallthru
      _
    // Predicated region
    $region90: #{tpu_custom_call.1} parent=1 // pred_check
      _
    $region91: #{tpu_custom_call.1} parent=1 // pred_check_branch
      %173 = sbr.rel (0) target = $region93
    $region92: #{tpu_custom_call.1} parent=1 // pred_region
      %174 = dma.done [#allocation12], 16
    $region93: #{tpu_custom_call.1} parent=1 // pred_fallthru
      _
    // Predicated region
    $region94: #{tpu_custom_call.1} parent=1 // pred_check
      _
    $region95: #{tpu_custom_call.1} parent=1 // pred_check_branch
      %176 = sbr.rel (0) target = $region97
    $region96: #{tpu_custom_call.1} parent=1 // pred_region
      %177 = dma.done [#allocation12], 1024
    $region97: #{tpu_custom_call.1} parent=1 // pred_fallthru
      _
    // Predicated region
    $region98: #{tpu_custom_call.1} parent=1 // pred_check
      _
    $region99: #{tpu_custom_call.1} parent=1 // pred_check_branch
      %179 = sbr.rel (0) target = $region101
    $region100: #{tpu_custom_call.1} parent=1 // pred_region
      %180 = dma.done [#allocation15], 16
    $region101: #{tpu_custom_call.1} parent=1 // pred_fallthru
      _
    // Predicated region
    $region102: #{tpu_custom_call.1} parent=1 // pred_check
      _
    $region103: #{tpu_custom_call.1} parent=1 // pred_check_branch
      %182 = sbr.rel (0) target = $region105
    $region104: #{tpu_custom_call.1} parent=1 // pred_region
      %183 = dma.done [#allocation15], 1024
    $region105: #{tpu_custom_call.1} parent=1 // pred_fallthru
      _
    // Predicated region
    $region106: #{tpu_custom_call.1} parent=1 // pred_check
      _
    $region107: #{tpu_custom_call.1} parent=1 // pred_check_branch
      %185 = sbr.rel (0) target = $region109
    $region108: #{tpu_custom_call.1} parent=1 // pred_region
      %186 = dma.done [#allocation18], 16
    $region109: #{tpu_custom_call.1} parent=1 // pred_fallthru
      _
    %v188 = vlaneseq
    %v189 = vand.u32 %v188, 127
    %v190 = vld [vmem:[%s0] sm:$0xff]
    %191 = vset.pattern.permute.xlu0 0
    %192 = vperm.xlu0 %191, %v190
    %v193 = vpop.permute.xlu0 %192
    %vm194 = vcmp.eq.s32.totalorder %v189, %v193
    %v195 = vadd.s32 %v190, 11
    %196 = vset.pattern.permute.xlu0 1
    %197 = vperm.xlu0 %196, %v195
    %v198 = vpop.permute.xlu0 %197
    %vm199 = vcmp.eq.s32.totalorder %v189, %v198
    %vm200 = vmor %vm194, %vm199
    %v201 = vadd.s32 %v190, 18
    %202 = vset.pattern.permute.xlu0 2
    %203 = vperm.xlu0 %202, %v201
    %v204 = vpop.permute.xlu0 %203
    %vm205 = vcmp.eq.s32.totalorder %v189, %v204
    %vm206 = vmor %vm200, %vm205
    %v207 = vsel %vm206, 1, 0
    %v208 = vcvt.s32.f32 %v207
    %v209 = vpack.c.bf16 %v208, %v208
    %v210 = vld [vmem:[#allocation2] sm:$0xff]
    %v211 = vld [vmem:[#allocation2 + $0x8] sm:$0xf]
    %v212 = vld [vmem:[#allocation2 + $0xc] sm:$0xff]
    %v213 = vld [vmem:[#allocation2 + $0x14] sm:$0xf]
    %v214 = vld [vmem:[#allocation2 + $0x18] sm:$0xff]
    %v215 = vld [vmem:[#allocation2 + $0x20] sm:$0xf]
    %v216 = vld [vmem:[#allocation2 + $0x24] sm:$0xff]
    %v217 = vld [vmem:[#allocation2 + $0x2c] sm:$0xf]
    %v218 = vld [vmem:[#allocation2 + $0x30] sm:$0xff]
    %v219 = vld [vmem:[#allocation2 + $0x38] sm:$0xf]
    %v220 = vld [vmem:[#allocation2 + $0x3c] sm:$0xff]
    %v221 = vld [vmem:[#allocation2 + $0x44] sm:$0xf]
    %v222 = vld [vmem:[#allocation2 + $0x48] sm:$0xff]
    %v223 = vld [vmem:[#allocation2 + $0x50] sm:$0xf]
    %v224 = vld [vmem:[#allocation2 + $0x54] sm:$0xff]
    %v225 = vld [vmem:[#allocation2 + $0x5c] sm:$0xf]
    %v226 = vld [vmem:[#allocation2 + $0x60] sm:$0xff]
    %v227 = vld [vmem:[#allocation2 + $0x68] sm:$0xf]
    %v228 = vld [vmem:[#allocation2 + $0x6c] sm:$0xff]
    %v229 = vld [vmem:[#allocation2 + $0x74] sm:$0xf]
    %v230 = vld [vmem:[#allocation2 + $0x78] sm:$0xff]
    %v231 = vld [vmem:[#allocation2 + $0x80] sm:$0xf]
    %v232 = vld [vmem:[#allocation2 + $0x84] sm:$0xff]
    %v233 = vld [vmem:[#allocation2 + $0x8c] sm:$0xf]
    %v234 = vld [vmem:[#allocation2 + $0x90] sm:$0xff]
    %v235 = vld [vmem:[#allocation2 + $0x98] sm:$0xf]
    %v236 = vld [vmem:[#allocation2 + $0x9c] sm:$0xff]
    %v237 = vld [vmem:[#allocation2 + $0xa4] sm:$0xf]
    %v238 = vld [vmem:[#allocation2 + $0xa8] sm:$0xff]
    %v239 = vld [vmem:[#allocation2 + $0xb0] sm:$0xf]
    %v240 = vld [vmem:[#allocation2 + $0xb4] sm:$0xff]
    %v241 = vld [vmem:[#allocation2 + $0xbc] sm:$0xf]
    %v274 = vunpack.c.l.b16 %v210
    %v275 = vunpack.c.h.b16 %v210
    %v276 = vunpack.c.l.b16 %v211
    %v277 = vunpack.c.l.b16 %v212
    %v278 = vunpack.c.h.b16 %v212
    %v279 = vunpack.c.l.b16 %v213
    %v280 = vunpack.c.l.b16 %v214
    %v281 = vunpack.c.h.b16 %v214
    %v282 = vunpack.c.l.b16 %v215
    %v283 = vunpack.c.l.b16 %v216
    %v284 = vunpack.c.h.b16 %v216
    %v285 = vunpack.c.l.b16 %v217
    %v286 = vunpack.c.l.b16 %v218
    %v287 = vunpack.c.h.b16 %v218
    %v288 = vunpack.c.l.b16 %v219
    %v289 = vunpack.c.l.b16 %v220
    %v290 = vunpack.c.h.b16 %v220
    %v291 = vunpack.c.l.b16 %v221
    %v292 = vunpack.c.l.b16 %v222
    %v293 = vunpack.c.h.b16 %v222
    %v294 = vunpack.c.l.b16 %v223
    %v295 = vunpack.c.l.b16 %v224
    %v296 = vunpack.c.h.b16 %v224
    %v297 = vunpack.c.l.b16 %v225
    %v298 = vunpack.c.l.b16 %v226
    %v299 = vunpack.c.h.b16 %v226
    %v300 = vunpack.c.l.b16 %v227
    %v301 = vunpack.c.l.b16 %v228
    %v302 = vunpack.c.h.b16 %v228
    %v303 = vunpack.c.l.b16 %v229
    %v304 = vunpack.c.l.b16 %v230
    %v305 = vunpack.c.h.b16 %v230
    %v306 = vunpack.c.l.b16 %v231
    %v307 = vunpack.c.l.b16 %v232
    %v308 = vunpack.c.h.b16 %v232
    %v309 = vunpack.c.l.b16 %v233
    %v310 = vunpack.c.l.b16 %v234
    %v311 = vunpack.c.h.b16 %v234
    %v312 = vunpack.c.l.b16 %v235
    %v313 = vunpack.c.l.b16 %v236
    %v314 = vunpack.c.h.b16 %v236
    %v315 = vunpack.c.l.b16 %v237
    %v316 = vunpack.c.l.b16 %v238
    %v317 = vunpack.c.h.b16 %v238
    %v318 = vunpack.c.l.b16 %v239
    %v319 = vunpack.c.l.b16 %v240
    %v320 = vunpack.c.h.b16 %v240
    %v321 = vunpack.c.l.b16 %v241
    %v322 = vpack.c.b16 %v277, %v274
    %v323 = vpack.c.b16 %v278, %v275
    %v324 = vpack.c.b16 %v279, %v276
    %v325 = vpack.c.b16 %v283, %v280
    %v326 = vpack.c.b16 %v284, %v281
    %v327 = vpack.c.b16 %v285, %v282
    %v328 = vpack.c.b16 %v289, %v286
    %v329 = vpack.c.b16 %v290, %v287
    %v330 = vpack.c.b16 %v291, %v288
    %v331 = vpack.c.b16 %v295, %v292
    %v332 = vpack.c.b16 %v296, %v293
    %v333 = vpack.c.b16 %v297, %v294
    %v334 = vpack.c.b16 %v301, %v298
    %v335 = vpack.c.b16 %v302, %v299
    %v336 = vpack.c.b16 %v303, %v300
    %v337 = vpack.c.b16 %v307, %v304
    %v338 = vpack.c.b16 %v308, %v305
    %v339 = vpack.c.b16 %v309, %v306
    %v340 = vpack.c.b16 %v313, %v310
    %v341 = vpack.c.b16 %v314, %v311
    %v342 = vpack.c.b16 %v315, %v312
    %v343 = vpack.c.b16 %v319, %v316
    %v344 = vpack.c.b16 %v320, %v317
    %v345 = vpack.c.b16 %v321, %v318
    %370 = vmatprep.subr.bf16.mxu0 %v323
    %371 = vmatpush1.bf16.msra.mxu0 %v322
    %372 = vmatprep.subr.bf16.mxu0 %v326
    %373 = vmatpush1.bf16.msra.mxu0 %v325
    %374 = vmatprep.subr.bf16.mxu0 %v329
    %375 = vmatpush1.bf16.msra.mxu0 %v328
    %376 = vmatprep.subr.bf16.mxu0 %v332
    %377 = vmatpush1.bf16.msra.mxu0 %v331
    %378 = vmatprep.subr.bf16.mxu0 %v335
    %379 = vmatpush1.bf16.msra.mxu0 %v334
    %380 = vmatprep.subr.bf16.mxu0 %v338
    %381 = vmatpush1.bf16.msra.mxu0 %v337
    %382 = vmatprep.subr.bf16.mxu0 %v341
    %383 = vmatpush1.bf16.msra.mxu0 %v340
    %384 = vmatprep.subr.bf16.mxu0 %v344
    %385 = vmatpush1.bf16.msra.mxu0 %v343
    %386 = vmatprep.subr.bf16.mxu0 0
    %387 = vmatpush1.bf16.msra.mxu0 0
    %388 = vmatprep.subr.bf16.mxu0 0
    %389 = vmatpush1.bf16.msra.mxu0 0
    %390 = vmatprep.subr.bf16.mxu0 0
    %391 = vmatpush1.bf16.msra.mxu0 0
    %392 = vmatprep.subr.bf16.mxu0 0
    %393 = vmatpush1.bf16.msra.mxu0 0
    %394 = vmatprep.subr.bf16.mxu0 0
    %395 = vmatpush1.bf16.msra.mxu0 0
    %396 = vmatprep.subr.bf16.mxu0 0
    %397 = vmatpush1.bf16.msra.mxu0 0
    %398 = vmatprep.subr.bf16.mxu0 0
    %399 = vmatpush1.bf16.msra.mxu0 0
    %400 = vmatprep.subr.bf16.mxu0 0
    %401 = vmatpush1.bf16.msra.mxu0 0
    %402 = vmatprep.mubr.bf16.mxu0 0
    %403 = vmatmul.mubr.bf16.gmra.mrb[0].mxu0 %v209
    %v404 = vpop.f32.mrb[0].mxu0
    %v405 = vadd.f32 0.0, %v404
    %v406 = vpop.f32.mrb[0].mxu0
    %v407 = vadd.f32 0.0, %v406
    %v408 = vpop.f32.mrb[0].mxu0
    %v409 = vpop.f32.mrb[0].mxu0
    %410 = vdwg.mxu0
    %411 = vmatprep.subr.bf16.mxu0 0
    %412 = vmatpush1.bf16.msra.mxu0 %v324
    %413 = vmatprep.subr.bf16.mxu0 0
    %414 = vmatpush1.bf16.msra.mxu0 %v327
    %415 = vmatprep.subr.bf16.mxu0 0
    %416 = vmatpush1.bf16.msra.mxu0 %v330
    %417 = vmatprep.subr.bf16.mxu0 0
    %418 = vmatpush1.bf16.msra.mxu0 %v333
    %419 = vmatprep.subr.bf16.mxu0 0
    %420 = vmatpush1.bf16.msra.mxu0 %v336
    %421 = vmatprep.subr.bf16.mxu0 0
    %422 = vmatpush1.bf16.msra.mxu0 %v339
    %423 = vmatprep.subr.bf16.mxu0 0
    %424 = vmatpush1.bf16.msra.mxu0 %v342
    %425 = vmatprep.subr.bf16.mxu0 0
    %426 = vmatpush1.bf16.msra.mxu0 %v345
    %427 = vmatprep.subr.bf16.mxu0 0
    %428 = vmatpush1.bf16.msra.mxu0 0
    %429 = vmatprep.subr.bf16.mxu0 0
    %430 = vmatpush1.bf16.msra.mxu0 0
    %431 = vmatprep.subr.bf16.mxu0 0
    %432 = vmatpush1.bf16.msra.mxu0 0
    %433 = vmatprep.subr.bf16.mxu0 0
    %434 = vmatpush1.bf16.msra.mxu0 0
    %435 = vmatprep.subr.bf16.mxu0 0
    %436 = vmatpush1.bf16.msra.mxu0 0
    %437 = vmatprep.subr.bf16.mxu0 0
    %438 = vmatpush1.bf16.msra.mxu0 0
    %439 = vmatprep.subr.bf16.mxu0 0
    %440 = vmatpush1.bf16.msra.mxu0 0
    %441 = vmatprep.subr.bf16.mxu0 0
    %442 = vmatpush1.bf16.msra.mxu0 0
    %443 = vmatprep.mubr.bf16.mxu0 0
    %444 = vmatmul.mubr.bf16.gmra.mrb[0].mxu0 %v209
    %v445 = vpop.f32.mrb[0].mxu0
    %v446 = vadd.f32 0.0, %v445
    %v447 = vpop.f32.mrb[0].mxu0
    %v448 = vpop.f32.mrb[0].mxu0
    %v449 = vpop.f32.mrb[0].mxu0
    %450 = vdwg.mxu0
    %v451 = vld [vmem:[%s2] sm:$0x1]
    %v453 = vlaneseq
    %v454 = vshrl.u32 %v453, 7
    %v455 = vsub.s32 0, %v454
    %v456 = vrot.slane %v451, %v455
    %v458 = vadd.f32 %v405, %v456
    %v459 = vmax.f32 %v458, 0.0
    %v460 = vpack.c.bf16 %v459, %v459
    %v461 = vld [vmem:[#allocation5] sm:$0xf]
    %v462 = vld [vmem:[#allocation5 + $0x4] sm:$0xf]
    %v463 = vld [vmem:[#allocation5 + $0x8] sm:$0xf]
    %v464 = vld [vmem:[#allocation5 + $0xc] sm:$0xf]
    %v465 = vld [vmem:[#allocation5 + $0x10] sm:$0xf]
    %v466 = vld [vmem:[#allocation5 + $0x14] sm:$0xf]
    %v467 = vld [vmem:[#allocation5 + $0x18] sm:$0xf]
    %v468 = vld [vmem:[#allocation5 + $0x1c] sm:$0xf]
    %v469 = vld [vmem:[#allocation5 + $0x20] sm:$0xf]
    %v470 = vld [vmem:[#allocation5 + $0x24] sm:$0xf]
    %v471 = vld [vmem:[#allocation5 + $0x28] sm:$0xf]
    %v472 = vld [vmem:[#allocation5 + $0x2c] sm:$0xf]
    %v473 = vld [vmem:[#allocation5 + $0x30] sm:$0xf]
    %v474 = vld [vmem:[#allocation5 + $0x34] sm:$0xf]
    %v475 = vld [vmem:[#allocation5 + $0x38] sm:$0xf]
    %v476 = vld [vmem:[#allocation5 + $0x3c] sm:$0xf]
    %v477 = vld [vmem:[%s4] sm:$0x1]
    %v479 = vlaneseq
    %v480 = vshrl.u32 %v479, 7
    %v481 = vsub.s32 0, %v480
    %v482 = vrot.slane %v477, %v481
    %v500 = vunpack.c.l.b16 %v461
    %v501 = vunpack.c.l.b16 %v462
    %v502 = vunpack.c.l.b16 %v463
    %v503 = vunpack.c.l.b16 %v464
    %v504 = vunpack.c.l.b16 %v465
    %v505 = vunpack.c.l.b16 %v466
    %v506 = vunpack.c.l.b16 %v467
    %v507 = vunpack.c.l.b16 %v468
    %v508 = vunpack.c.l.b16 %v469
    %v509 = vunpack.c.l.b16 %v470
    %v510 = vunpack.c.l.b16 %v471
    %v511 = vunpack.c.l.b16 %v472
    %v512 = vunpack.c.l.b16 %v473
    %v513 = vunpack.c.l.b16 %v474
    %v514 = vunpack.c.l.b16 %v475
    %v515 = vunpack.c.l.b16 %v476
    %v516 = vpack.c.b16 %v501, %v500
    %v517 = vpack.c.b16 %v503, %v502
    %v518 = vpack.c.b16 %v505, %v504
    %v519 = vpack.c.b16 %v507, %v506
    %v520 = vpack.c.b16 %v509, %v508
    %v521 = vpack.c.b16 %v511, %v510
    %v522 = vpack.c.b16 %v513, %v512
    %v523 = vpack.c.b16 %v515, %v514
    %532 = vmatprep.subr.bf16.mxu0 0
    %533 = vmatpush1.bf16.msra.mxu0 %v516
    %534 = vmatprep.subr.bf16.mxu0 0
    %535 = vmatpush1.bf16.msra.mxu0 %v517
    %536 = vmatprep.subr.bf16.mxu0 0
    %537 = vmatpush1.bf16.msra.mxu0 %v518
    %538 = vmatprep.subr.bf16.mxu0 0
    %539 = vmatpush1.bf16.msra.mxu0 %v519
    %540 = vmatprep.subr.bf16.mxu0 0
    %541 = vmatpush1.bf16.msra.mxu0 %v520
    %542 = vmatprep.subr.bf16.mxu0 0
    %543 = vmatpush1.bf16.msra.mxu0 %v521
    %544 = vmatprep.subr.bf16.mxu0 0
    %545 = vmatpush1.bf16.msra.mxu0 %v522
    %546 = vmatprep.subr.bf16.mxu0 0
    %547 = vmatpush1.bf16.msra.mxu0 %v523
    %548 = vmatprep.subr.bf16.mxu0 0
    %549 = vmatpush1.bf16.msra.mxu0 0
    %550 = vmatprep.subr.bf16.mxu0 0
    %551 = vmatpush1.bf16.msra.mxu0 0
    %552 = vmatprep.subr.bf16.mxu0 0
    %553 = vmatpush1.bf16.msra.mxu0 0
    %554 = vmatprep.subr.bf16.mxu0 0
    %555 = vmatpush1.bf16.msra.mxu0 0
    %556 = vmatprep.subr.bf16.mxu0 0
    %557 = vmatpush1.bf16.msra.mxu0 0
    %558 = vmatprep.subr.bf16.mxu0 0
    %559 = vmatpush1.bf16.msra.mxu0 0
    %560 = vmatprep.subr.bf16.mxu0 0
    %561 = vmatpush1.bf16.msra.mxu0 0
    %562 = vmatprep.subr.bf16.mxu0 0
    %563 = vmatpush1.bf16.msra.mxu0 0
    %564 = vmatprep.mubr.bf16.mxu0 0
    %565 = vmatmul.mubr.bf16.gmra.mrb[0].mxu0 %v460
    %v566 = vpop.f32.mrb[0].mxu0
    %v567 = vadd.f32 %v482, %v566
    %v568 = vpop.f32.mrb[0].mxu0
    %v569 = vpop.f32.mrb[0].mxu0
    %v570 = vpop.f32.mrb[0].mxu0
    %571 = vdwg.mxu0
    %v572 = vmax.f32 %v567, 0.0
    %v573 = vpack.c.bf16 %v572, %v572
    %v574 = vld [vmem:[#allocation7] sm:$0xf]
    %v575 = vld [vmem:[#allocation7 + $0x4] sm:$0xf]
    %v576 = vld [vmem:[#allocation7 + $0x8] sm:$0xf]
    %v577 = vld [vmem:[#allocation7 + $0xc] sm:$0xf]
    %v578 = vld [vmem:[#allocation7 + $0x10] sm:$0xf]
    %v579 = vld [vmem:[#allocation7 + $0x14] sm:$0xf]
    %v580 = vld [vmem:[#allocation7 + $0x18] sm:$0xf]
    %v581 = vld [vmem:[#allocation7 + $0x1c] sm:$0xf]
    %v582 = vld [vmem:[#allocation7 + $0x20] sm:$0xf]
    %v583 = vld [vmem:[#allocation7 + $0x24] sm:$0xf]
    %v584 = vld [vmem:[#allocation7 + $0x28] sm:$0xf]
    %v585 = vld [vmem:[#allocation7 + $0x2c] sm:$0xf]
    %v586 = vld [vmem:[#allocation7 + $0x30] sm:$0xf]
    %v587 = vld [vmem:[#allocation7 + $0x34] sm:$0xf]
    %v588 = vld [vmem:[#allocation7 + $0x38] sm:$0xf]
    %v589 = vld [vmem:[#allocation7 + $0x3c] sm:$0xf]
    %v590 = vld [vmem:[%s6] sm:$0x1]
    %v592 = vlaneseq
    %v593 = vshrl.u32 %v592, 7
    %v594 = vsub.s32 0, %v593
    %v595 = vrot.slane %v590, %v594
    %v613 = vunpack.c.l.b16 %v574
    %v614 = vunpack.c.l.b16 %v575
    %v615 = vunpack.c.l.b16 %v576
    %v616 = vunpack.c.l.b16 %v577
    %v617 = vunpack.c.l.b16 %v578
    %v618 = vunpack.c.l.b16 %v579
    %v619 = vunpack.c.l.b16 %v580
    %v620 = vunpack.c.l.b16 %v581
    %v621 = vunpack.c.l.b16 %v582
    %v622 = vunpack.c.l.b16 %v583
    %v623 = vunpack.c.l.b16 %v584
    %v624 = vunpack.c.l.b16 %v585
    %v625 = vunpack.c.l.b16 %v586
    %v626 = vunpack.c.l.b16 %v587
    %v627 = vunpack.c.l.b16 %v588
    %v628 = vunpack.c.l.b16 %v589
    %v629 = vpack.c.b16 %v614, %v613
    %v630 = vpack.c.b16 %v616, %v615
    %v631 = vpack.c.b16 %v618, %v617
    %v632 = vpack.c.b16 %v620, %v619
    %v633 = vpack.c.b16 %v622, %v621
    %v634 = vpack.c.b16 %v624, %v623
    %v635 = vpack.c.b16 %v626, %v625
    %v636 = vpack.c.b16 %v628, %v627
    %645 = vmatprep.subr.bf16.mxu0 0
    %646 = vmatpush1.bf16.msra.mxu0 %v629
    %647 = vmatprep.subr.bf16.mxu0 0
    %648 = vmatpush1.bf16.msra.mxu0 %v630
    %649 = vmatprep.subr.bf16.mxu0 0
    %650 = vmatpush1.bf16.msra.mxu0 %v631
    %651 = vmatprep.subr.bf16.mxu0 0
    %652 = vmatpush1.bf16.msra.mxu0 %v632
    %653 = vmatprep.subr.bf16.mxu0 0
    %654 = vmatpush1.bf16.msra.mxu0 %v633
    %655 = vmatprep.subr.bf16.mxu0 0
    %656 = vmatpush1.bf16.msra.mxu0 %v634
    %657 = vmatprep.subr.bf16.mxu0 0
    %658 = vmatpush1.bf16.msra.mxu0 %v635
    %659 = vmatprep.subr.bf16.mxu0 0
    %660 = vmatpush1.bf16.msra.mxu0 %v636
    %661 = vmatprep.subr.bf16.mxu0 0
    %662 = vmatpush1.bf16.msra.mxu0 0
    %663 = vmatprep.subr.bf16.mxu0 0
    %664 = vmatpush1.bf16.msra.mxu0 0
    %665 = vmatprep.subr.bf16.mxu0 0
    %666 = vmatpush1.bf16.msra.mxu0 0
    %667 = vmatprep.subr.bf16.mxu0 0
    %668 = vmatpush1.bf16.msra.mxu0 0
    %669 = vmatprep.subr.bf16.mxu0 0
    %670 = vmatpush1.bf16.msra.mxu0 0
    %671 = vmatprep.subr.bf16.mxu0 0
    %672 = vmatpush1.bf16.msra.mxu0 0
    %673 = vmatprep.subr.bf16.mxu0 0
    %674 = vmatpush1.bf16.msra.mxu0 0
    %675 = vmatprep.subr.bf16.mxu0 0
    %676 = vmatpush1.bf16.msra.mxu0 0
    %677 = vmatprep.mubr.bf16.mxu0 0
    %678 = vmatmul.mubr.bf16.gmra.mrb[0].mxu0 %v573
    %v679 = vpop.f32.mrb[0].mxu0
    %v680 = vadd.f32 %v595, %v679
    %v681 = vpop.f32.mrb[0].mxu0
    %v682 = vpop.f32.mrb[0].mxu0
    %v683 = vpop.f32.mrb[0].mxu0
    %684 = vdwg.mxu0
    %v685 = vld [vmem:[#allocation8] sm:$0xf]
    %v686 = vld [vmem:[#allocation8 + $0x4] sm:$0xf]
    %v687 = vld [vmem:[#allocation8 + $0x8] sm:$0xf]
    %v688 = vld [vmem:[#allocation8 + $0xc] sm:$0xf]
    %v689 = vld [vmem:[#allocation8 + $0x10] sm:$0xf]
    %v690 = vld [vmem:[#allocation8 + $0x14] sm:$0xf]
    %v691 = vld [vmem:[#allocation8 + $0x18] sm:$0xf]
    %v692 = vld [vmem:[#allocation8 + $0x1c] sm:$0xf]
    %v693 = vld [vmem:[#allocation8 + $0x20] sm:$0xf]
    %v694 = vld [vmem:[#allocation8 + $0x24] sm:$0xf]
    %v695 = vld [vmem:[#allocation8 + $0x28] sm:$0xf]
    %v696 = vld [vmem:[#allocation8 + $0x2c] sm:$0xf]
    %v697 = vld [vmem:[#allocation8 + $0x30] sm:$0xf]
    %v698 = vld [vmem:[#allocation8 + $0x34] sm:$0xf]
    %v699 = vld [vmem:[#allocation8 + $0x38] sm:$0xf]
    %v700 = vld [vmem:[#allocation8 + $0x3c] sm:$0xf]
    %v717 = vunpack.c.l.b16 %v685
    %v718 = vunpack.c.l.b16 %v686
    %v719 = vunpack.c.l.b16 %v687
    %v720 = vunpack.c.l.b16 %v688
    %v721 = vunpack.c.l.b16 %v689
    %v722 = vunpack.c.l.b16 %v690
    %v723 = vunpack.c.l.b16 %v691
    %v724 = vunpack.c.l.b16 %v692
    %v725 = vunpack.c.l.b16 %v693
    %v726 = vunpack.c.l.b16 %v694
    %v727 = vunpack.c.l.b16 %v695
    %v728 = vunpack.c.l.b16 %v696
    %v729 = vunpack.c.l.b16 %v697
    %v730 = vunpack.c.l.b16 %v698
    %v731 = vunpack.c.l.b16 %v699
    %v732 = vunpack.c.l.b16 %v700
    %v733 = vpack.c.b16 %v718, %v717
    %v734 = vpack.c.b16 %v720, %v719
    %v735 = vpack.c.b16 %v722, %v721
    %v736 = vpack.c.b16 %v724, %v723
    %v737 = vpack.c.b16 %v726, %v725
    %v738 = vpack.c.b16 %v728, %v727
    %v739 = vpack.c.b16 %v730, %v729
    %v740 = vpack.c.b16 %v732, %v731
    %749 = vmatprep.subr.bf16.mxu0 0
    %750 = vmatpush1.bf16.msra.mxu0 %v733
    %751 = vmatprep.subr.bf16.mxu0 0
    %752 = vmatpush1.bf16.msra.mxu0 %v734
    %753 = vmatprep.subr.bf16.mxu0 0
    %754 = vmatpush1.bf16.msra.mxu0 %v735
    %755 = vmatprep.subr.bf16.mxu0 0
    %756 = vmatpush1.bf16.msra.mxu0 %v736
    %757 = vmatprep.subr.bf16.mxu0 0
    %758 = vmatpush1.bf16.msra.mxu0 %v737
    %759 = vmatprep.subr.bf16.mxu0 0
    %760 = vmatpush1.bf16.msra.mxu0 %v738
    %761 = vmatprep.subr.bf16.mxu0 0
    %762 = vmatpush1.bf16.msra.mxu0 %v739
    %763 = vmatprep.subr.bf16.mxu0 0
    %764 = vmatpush1.bf16.msra.mxu0 %v740
    %765 = vmatprep.subr.bf16.mxu0 0
    %766 = vmatpush1.bf16.msra.mxu0 0
    %767 = vmatprep.subr.bf16.mxu0 0
    %768 = vmatpush1.bf16.msra.mxu0 0
    %769 = vmatprep.subr.bf16.mxu0 0
    %770 = vmatpush1.bf16.msra.mxu0 0
    %771 = vmatprep.subr.bf16.mxu0 0
    %772 = vmatpush1.bf16.msra.mxu0 0
    %773 = vmatprep.subr.bf16.mxu0 0
    %774 = vmatpush1.bf16.msra.mxu0 0
    %775 = vmatprep.subr.bf16.mxu0 0
    %776 = vmatpush1.bf16.msra.mxu0 0
    %777 = vmatprep.subr.bf16.mxu0 0
    %778 = vmatpush1.bf16.msra.mxu0 0
    %779 = vmatprep.subr.bf16.mxu0 0
    %780 = vmatpush1.bf16.msra.mxu0 0
    %781 = vmatprep.mubr.bf16.mxu0 0
    %782 = vmatmul.mubr.bf16.gmra.mrb[0].mxu0 %v573
    %v783 = vpop.f32.mrb[0].mxu0
    %v784 = vadd.f32 0.0, %v783
    %v785 = vpop.f32.mrb[0].mxu0
    %v786 = vpop.f32.mrb[0].mxu0
    %v787 = vpop.f32.mrb[0].mxu0
    %788 = vdwg.mxu0
    %v789 = vadd.f32 %v407, %v784
    %v790 = vld [vmem:[%s8] sm:$0x1]
    %v792 = vlaneseq
    %v793 = vshrl.u32 %v792, 7
    %v794 = vsub.s32 0, %v793
    %v795 = vrot.slane %v790, %v794
    %v797 = vadd.f32 %v789, %v795
    %v798 = vmax.f32 %v797, 0.0
    %v799 = vpack.c.bf16 %v798, %v798
    %v800 = vld [vmem:[#allocation10] sm:$0xf]
    %v801 = vld [vmem:[#allocation10 + $0x4] sm:$0xf]
    %v802 = vld [vmem:[#allocation10 + $0x8] sm:$0xf]
    %v803 = vld [vmem:[#allocation10 + $0xc] sm:$0xf]
    %v804 = vld [vmem:[#allocation10 + $0x10] sm:$0xf]
    %v805 = vld [vmem:[#allocation10 + $0x14] sm:$0xf]
    %v806 = vld [vmem:[#allocation10 + $0x18] sm:$0xf]
    %v807 = vld [vmem:[#allocation10 + $0x1c] sm:$0xf]
    %v808 = vld [vmem:[#allocation10 + $0x20] sm:$0xf]
    %v809 = vld [vmem:[#allocation10 + $0x24] sm:$0xf]
    %v810 = vld [vmem:[#allocation10 + $0x28] sm:$0xf]
    %v811 = vld [vmem:[#allocation10 + $0x2c] sm:$0xf]
    %v812 = vld [vmem:[#allocation10 + $0x30] sm:$0xf]
    %v813 = vld [vmem:[#allocation10 + $0x34] sm:$0xf]
    %v814 = vld [vmem:[#allocation10 + $0x38] sm:$0xf]
    %v815 = vld [vmem:[#allocation10 + $0x3c] sm:$0xf]
    %v816 = vld [vmem:[#allocation11] sm:$0x1]
    %v818 = vlaneseq
    %v819 = vshrl.u32 %v818, 7
    %v820 = vsub.s32 0, %v819
    %v821 = vrot.slane %v816, %v820
    %v839 = vunpack.c.l.b16 %v800
    %v840 = vunpack.c.l.b16 %v801
    %v841 = vunpack.c.l.b16 %v802
    %v842 = vunpack.c.l.b16 %v803
    %v843 = vunpack.c.l.b16 %v804
    %v844 = vunpack.c.l.b16 %v805
    %v845 = vunpack.c.l.b16 %v806
    %v846 = vunpack.c.l.b16 %v807
    %v847 = vunpack.c.l.b16 %v808
    %v848 = vunpack.c.l.b16 %v809
    %v849 = vunpack.c.l.b16 %v810
    %v850 = vunpack.c.l.b16 %v811
    %v851 = vunpack.c.l.b16 %v812
    %v852 = vunpack.c.l.b16 %v813
    %v853 = vunpack.c.l.b16 %v814
    %v854 = vunpack.c.l.b16 %v815
    %v855 = vpack.c.b16 %v840, %v839
    %v856 = vpack.c.b16 %v842, %v841
    %v857 = vpack.c.b16 %v844, %v843
    %v858 = vpack.c.b16 %v846, %v845
    %v859 = vpack.c.b16 %v848, %v847
    %v860 = vpack.c.b16 %v850, %v849
    %v861 = vpack.c.b16 %v852, %v851
    %v862 = vpack.c.b16 %v854, %v853
    %871 = vmatprep.subr.bf16.mxu0 0
    %872 = vmatpush1.bf16.msra.mxu0 %v855
    %873 = vmatprep.subr.bf16.mxu0 0
    %874 = vmatpush1.bf16.msra.mxu0 %v856
    %875 = vmatprep.subr.bf16.mxu0 0
    %876 = vmatpush1.bf16.msra.mxu0 %v857
    %877 = vmatprep.subr.bf16.mxu0 0
    %878 = vmatpush1.bf16.msra.mxu0 %v858
    %879 = vmatprep.subr.bf16.mxu0 0
    %880 = vmatpush1.bf16.msra.mxu0 %v859
    %881 = vmatprep.subr.bf16.mxu0 0
    %882 = vmatpush1.bf16.msra.mxu0 %v860
    %883 = vmatprep.subr.bf16.mxu0 0
    %884 = vmatpush1.bf16.msra.mxu0 %v861
    %885 = vmatprep.subr.bf16.mxu0 0
    %886 = vmatpush1.bf16.msra.mxu0 %v862
    %887 = vmatprep.subr.bf16.mxu0 0
    %888 = vmatpush1.bf16.msra.mxu0 0
    %889 = vmatprep.subr.bf16.mxu0 0
    %890 = vmatpush1.bf16.msra.mxu0 0
    %891 = vmatprep.subr.bf16.mxu0 0
    %892 = vmatpush1.bf16.msra.mxu0 0
    %893 = vmatprep.subr.bf16.mxu0 0
    %894 = vmatpush1.bf16.msra.mxu0 0
    %895 = vmatprep.subr.bf16.mxu0 0
    %896 = vmatpush1.bf16.msra.mxu0 0
    %897 = vmatprep.subr.bf16.mxu0 0
    %898 = vmatpush1.bf16.msra.mxu0 0
    %899 = vmatprep.subr.bf16.mxu0 0
    %900 = vmatpush1.bf16.msra.mxu0 0
    %901 = vmatprep.subr.bf16.mxu0 0
    %902 = vmatpush1.bf16.msra.mxu0 0
    %903 = vmatprep.mubr.bf16.mxu0 0
    %904 = vmatmul.mubr.bf16.gmra.mrb[0].mxu0 %v799
    %v905 = vpop.f32.mrb[0].mxu0
    %v906 = vadd.f32 %v821, %v905
    %v907 = vpop.f32.mrb[0].mxu0
    %v908 = vpop.f32.mrb[0].mxu0
    %v909 = vpop.f32.mrb[0].mxu0
    %910 = vdwg.mxu0
    %v911 = vld [vmem:[#allocation13] sm:$0xf]
    %v912 = vld [vmem:[#allocation13 + $0x4] sm:$0xf]
    %v913 = vld [vmem:[#allocation13 + $0x8] sm:$0xf]
    %v914 = vld [vmem:[#allocation13 + $0xc] sm:$0xf]
    %v915 = vld [vmem:[#allocation13 + $0x10] sm:$0xf]
    %v916 = vld [vmem:[#allocation13 + $0x14] sm:$0xf]
    %v917 = vld [vmem:[#allocation13 + $0x18] sm:$0xf]
    %v918 = vld [vmem:[#allocation13 + $0x1c] sm:$0xf]
    %v919 = vld [vmem:[#allocation13 + $0x20] sm:$0xf]
    %v920 = vld [vmem:[#allocation13 + $0x24] sm:$0xf]
    %v921 = vld [vmem:[#allocation13 + $0x28] sm:$0xf]
    %v922 = vld [vmem:[#allocation13 + $0x2c] sm:$0xf]
    %v923 = vld [vmem:[#allocation13 + $0x30] sm:$0xf]
    %v924 = vld [vmem:[#allocation13 + $0x34] sm:$0xf]
    %v925 = vld [vmem:[#allocation13 + $0x38] sm:$0xf]
    %v926 = vld [vmem:[#allocation13 + $0x3c] sm:$0xf]
    %v943 = vunpack.c.l.b16 %v911
    %v944 = vunpack.c.l.b16 %v912
    %v945 = vunpack.c.l.b16 %v913
    %v946 = vunpack.c.l.b16 %v914
    %v947 = vunpack.c.l.b16 %v915
    %v948 = vunpack.c.l.b16 %v916
    %v949 = vunpack.c.l.b16 %v917
    %v950 = vunpack.c.l.b16 %v918
    %v951 = vunpack.c.l.b16 %v919
    %v952 = vunpack.c.l.b16 %v920
    %v953 = vunpack.c.l.b16 %v921
    %v954 = vunpack.c.l.b16 %v922
    %v955 = vunpack.c.l.b16 %v923
    %v956 = vunpack.c.l.b16 %v924
    %v957 = vunpack.c.l.b16 %v925
    %v958 = vunpack.c.l.b16 %v926
    %v959 = vpack.c.b16 %v944, %v943
    %v960 = vpack.c.b16 %v946, %v945
    %v961 = vpack.c.b16 %v948, %v947
    %v962 = vpack.c.b16 %v950, %v949
    %v963 = vpack.c.b16 %v952, %v951
    %v964 = vpack.c.b16 %v954, %v953
    %v965 = vpack.c.b16 %v956, %v955
    %v966 = vpack.c.b16 %v958, %v957
    %975 = vmatprep.subr.bf16.mxu0 0
    %976 = vmatpush1.bf16.msra.mxu0 %v959
    %977 = vmatprep.subr.bf16.mxu0 0
    %978 = vmatpush1.bf16.msra.mxu0 %v960
    %979 = vmatprep.subr.bf16.mxu0 0
    %980 = vmatpush1.bf16.msra.mxu0 %v961
    %981 = vmatprep.subr.bf16.mxu0 0
    %982 = vmatpush1.bf16.msra.mxu0 %v962
    %983 = vmatprep.subr.bf16.mxu0 0
    %984 = vmatpush1.bf16.msra.mxu0 %v963
    %985 = vmatprep.subr.bf16.mxu0 0
    %986 = vmatpush1.bf16.msra.mxu0 %v964
    %987 = vmatprep.subr.bf16.mxu0 0
    %988 = vmatpush1.bf16.msra.mxu0 %v965
    %989 = vmatprep.subr.bf16.mxu0 0
    %990 = vmatpush1.bf16.msra.mxu0 %v966
    %991 = vmatprep.subr.bf16.mxu0 0
    %992 = vmatpush1.bf16.msra.mxu0 0
    %993 = vmatprep.subr.bf16.mxu0 0
    %994 = vmatpush1.bf16.msra.mxu0 0
    %995 = vmatprep.subr.bf16.mxu0 0
    %996 = vmatpush1.bf16.msra.mxu0 0
    %997 = vmatprep.subr.bf16.mxu0 0
    %998 = vmatpush1.bf16.msra.mxu0 0
    %999 = vmatprep.subr.bf16.mxu0 0
    %1000 = vmatpush1.bf16.msra.mxu0 0
    %1001 = vmatprep.subr.bf16.mxu0 0
    %1002 = vmatpush1.bf16.msra.mxu0 0
    %1003 = vmatprep.subr.bf16.mxu0 0
    %1004 = vmatpush1.bf16.msra.mxu0 0
    %1005 = vmatprep.subr.bf16.mxu0 0
    %1006 = vmatpush1.bf16.msra.mxu0 0
    %1007 = vmatprep.mubr.bf16.mxu0 0
    %1008 = vmatmul.mubr.bf16.gmra.mrb[0].mxu0 %v799
    %v1009 = vpop.f32.mrb[0].mxu0
    %v1010 = vadd.f32 0.0, %v1009
    %v1011 = vpop.f32.mrb[0].mxu0
    %v1012 = vpop.f32.mrb[0].mxu0
    %v1013 = vpop.f32.mrb[0].mxu0
    %1014 = vdwg.mxu0
    %v1015 = vadd.f32 %v446, %v1010
    %v1016 = vld [vmem:[#allocation14] sm:$0x1]
    %v1018 = vlaneseq
    %v1019 = vshrl.u32 %v1018, 7
    %v1020 = vsub.s32 0, %v1019
    %v1021 = vrot.slane %v1016, %v1020
    %v1023 = vadd.f32 %v1015, %v1021
    %v1024 = vmax.f32 %v1023, 0.0
    %v1025 = vpack.c.bf16 %v1024, %v1024
    %v1026 = vld [vmem:[#allocation16] sm:$0xf]
    %v1027 = vld [vmem:[#allocation16 + $0x4] sm:$0xf]
    %v1028 = vld [vmem:[#allocation16 + $0x8] sm:$0xf]
    %v1029 = vld [vmem:[#allocation16 + $0xc] sm:$0xf]
    %v1030 = vld [vmem:[#allocation16 + $0x10] sm:$0xf]
    %v1031 = vld [vmem:[#allocation16 + $0x14] sm:$0xf]
    %v1032 = vld [vmem:[#allocation16 + $0x18] sm:$0xf]
    %v1033 = vld [vmem:[#allocation16 + $0x1c] sm:$0xf]
    %v1034 = vld [vmem:[#allocation16 + $0x20] sm:$0xf]
    %v1035 = vld [vmem:[#allocation16 + $0x24] sm:$0xf]
    %v1036 = vld [vmem:[#allocation16 + $0x28] sm:$0xf]
    %v1037 = vld [vmem:[#allocation16 + $0x2c] sm:$0xf]
    %v1038 = vld [vmem:[#allocation16 + $0x30] sm:$0xf]
    %v1039 = vld [vmem:[#allocation16 + $0x34] sm:$0xf]
    %v1040 = vld [vmem:[#allocation16 + $0x38] sm:$0xf]
    %v1041 = vld [vmem:[#allocation16 + $0x3c] sm:$0xf]
    %v1042 = vld [vmem:[#allocation17] sm:$0x1]
    %v1044 = vlaneseq
    %v1045 = vshrl.u32 %v1044, 7
    %v1046 = vsub.s32 0, %v1045
    %v1047 = vrot.slane %v1042, %v1046
    %v1065 = vunpack.c.l.b16 %v1026
    %v1066 = vunpack.c.l.b16 %v1027
    %v1067 = vunpack.c.l.b16 %v1028
    %v1068 = vunpack.c.l.b16 %v1029
    %v1069 = vunpack.c.l.b16 %v1030
    %v1070 = vunpack.c.l.b16 %v1031
    %v1071 = vunpack.c.l.b16 %v1032
    %v1072 = vunpack.c.l.b16 %v1033
    %v1073 = vunpack.c.l.b16 %v1034
    %v1074 = vunpack.c.l.b16 %v1035
    %v1075 = vunpack.c.l.b16 %v1036
    %v1076 = vunpack.c.l.b16 %v1037
    %v1077 = vunpack.c.l.b16 %v1038
    %v1078 = vunpack.c.l.b16 %v1039
    %v1079 = vunpack.c.l.b16 %v1040
    %v1080 = vunpack.c.l.b16 %v1041
    %v1081 = vpack.c.b16 %v1066, %v1065
    %v1082 = vpack.c.b16 %v1068, %v1067
    %v1083 = vpack.c.b16 %v1070, %v1069
    %v1084 = vpack.c.b16 %v1072, %v1071
    %v1085 = vpack.c.b16 %v1074, %v1073
    %v1086 = vpack.c.b16 %v1076, %v1075
    %v1087 = vpack.c.b16 %v1078, %v1077
    %v1088 = vpack.c.b16 %v1080, %v1079
    %1097 = vmatprep.subr.bf16.mxu0 0
    %1098 = vmatpush1.bf16.msra.mxu0 %v1081
    %1099 = vmatprep.subr.bf16.mxu0 0
    %1100 = vmatpush1.bf16.msra.mxu0 %v1082
    %1101 = vmatprep.subr.bf16.mxu0 0
    %1102 = vmatpush1.bf16.msra.mxu0 %v1083
    %1103 = vmatprep.subr.bf16.mxu0 0
    %1104 = vmatpush1.bf16.msra.mxu0 %v1084
    %1105 = vmatprep.subr.bf16.mxu0 0
    %1106 = vmatpush1.bf16.msra.mxu0 %v1085
    %1107 = vmatprep.subr.bf16.mxu0 0
    %1108 = vmatpush1.bf16.msra.mxu0 %v1086
    %1109 = vmatprep.subr.bf16.mxu0 0
    %1110 = vmatpush1.bf16.msra.mxu0 %v1087
    %1111 = vmatprep.subr.bf16.mxu0 0
    %1112 = vmatpush1.bf16.msra.mxu0 %v1088
    %1113 = vmatprep.subr.bf16.mxu0 0
    %1114 = vmatpush1.bf16.msra.mxu0 0
    %1115 = vmatprep.subr.bf16.mxu0 0
    %1116 = vmatpush1.bf16.msra.mxu0 0
    %1117 = vmatprep.subr.bf16.mxu0 0
    %1118 = vmatpush1.bf16.msra.mxu0 0
    %1119 = vmatprep.subr.bf16.mxu0 0
    %1120 = vmatpush1.bf16.msra.mxu0 0
    %1121 = vmatprep.subr.bf16.mxu0 0
    %1122 = vmatpush1.bf16.msra.mxu0 0
    %1123 = vmatprep.subr.bf16.mxu0 0
    %1124 = vmatpush1.bf16.msra.mxu0 0
    %1125 = vmatprep.subr.bf16.mxu0 0
    %1126 = vmatpush1.bf16.msra.mxu0 0
    %1127 = vmatprep.subr.bf16.mxu0 0
    %1128 = vmatpush1.bf16.msra.mxu0 0
    %1129 = vmatprep.mubr.bf16.mxu0 0
    %1130 = vmatmul.mubr.bf16.gmra.mrb[0].mxu0 %v1025
    %v1131 = vpop.f32.mrb[0].mxu0
    %v1132 = vadd.f32 %v1047, %v1131
    %v1133 = vpop.f32.mrb[0].mxu0
    %v1134 = vpop.f32.mrb[0].mxu0
    %v1135 = vpop.f32.mrb[0].mxu0
    %1136 = vdwg.mxu0
    %v1137 = vmax.f32 %v1132, 0.0
    %v1138 = vpack.c.bf16 %v1137, %v1137
    %v1139 = vld [vmem:[%s15] sm:$0xf]
    %v1140 = vld [vmem:[%s15 + $0x4] sm:$0xf]
    %v1141 = vld [vmem:[%s15 + $0x8] sm:$0xf]
    %v1142 = vld [vmem:[%s15 + $0xc] sm:$0xf]
    %v1143 = vld [vmem:[%s15 + $0x10] sm:$0xf]
    %v1144 = vld [vmem:[%s15 + $0x14] sm:$0xf]
    %v1145 = vld [vmem:[%s15 + $0x18] sm:$0xf]
    %v1146 = vld [vmem:[%s15 + $0x1c] sm:$0xf]
    %v1147 = vld [vmem:[%s15 + $0x20] sm:$0xf]
    %v1148 = vld [vmem:[%s15 + $0x24] sm:$0xf]
    %v1149 = vld [vmem:[%s15 + $0x28] sm:$0xf]
    %v1150 = vld [vmem:[%s15 + $0x2c] sm:$0xf]
    %v1151 = vld [vmem:[%s15 + $0x30] sm:$0xf]
    %v1152 = vld [vmem:[%s15 + $0x34] sm:$0xf]
    %v1153 = vld [vmem:[%s15 + $0x38] sm:$0xf]
    %v1154 = vld [vmem:[%s15 + $0x3c] sm:$0xf]
    %v1155 = vld [vmem:[%s16] sm:$0x1]
    %v1157 = vlaneseq
    %v1158 = vshrl.u32 %v1157, 7
    %v1159 = vsub.s32 0, %v1158
    %v1160 = vrot.slane %v1155, %v1159
    %v1178 = vunpack.c.l.b16 %v1139
    %v1179 = vunpack.c.l.b16 %v1140
    %v1180 = vunpack.c.l.b16 %v1141
    %v1181 = vunpack.c.l.b16 %v1142
    %v1182 = vunpack.c.l.b16 %v1143
    %v1183 = vunpack.c.l.b16 %v1144
    %v1184 = vunpack.c.l.b16 %v1145
    %v1185 = vunpack.c.l.b16 %v1146
    %v1186 = vunpack.c.l.b16 %v1147
    %v1187 = vunpack.c.l.b16 %v1148
    %v1188 = vunpack.c.l.b16 %v1149
    %v1189 = vunpack.c.l.b16 %v1150
    %v1190 = vunpack.c.l.b16 %v1151
    %v1191 = vunpack.c.l.b16 %v1152
    %v1192 = vunpack.c.l.b16 %v1153
    %v1193 = vunpack.c.l.b16 %v1154
    %v1194 = vpack.c.b16 %v1179, %v1178
    %v1195 = vpack.c.b16 %v1181, %v1180
    %v1196 = vpack.c.b16 %v1183, %v1182
    %v1197 = vpack.c.b16 %v1185, %v1184
    %v1198 = vpack.c.b16 %v1187, %v1186
    %v1199 = vpack.c.b16 %v1189, %v1188
    %v1200 = vpack.c.b16 %v1191, %v1190
    %v1201 = vpack.c.b16 %v1193, %v1192
    %1210 = vmatprep.subr.bf16.mxu0 0
    %1211 = vmatpush1.bf16.msra.mxu0 %v1194
    %1212 = vmatprep.subr.bf16.mxu0 0
    %1213 = vmatpush1.bf16.msra.mxu0 %v1195
    %1214 = vmatprep.subr.bf16.mxu0 0
    %1215 = vmatpush1.bf16.msra.mxu0 %v1196
    %1216 = vmatprep.subr.bf16.mxu0 0
    %1217 = vmatpush1.bf16.msra.mxu0 %v1197
    %1218 = vmatprep.subr.bf16.mxu0 0
    %1219 = vmatpush1.bf16.msra.mxu0 %v1198
    %1220 = vmatprep.subr.bf16.mxu0 0
    %1221 = vmatpush1.bf16.msra.mxu0 %v1199
    %1222 = vmatprep.subr.bf16.mxu0 0
    %1223 = vmatpush1.bf16.msra.mxu0 %v1200
    %1224 = vmatprep.subr.bf16.mxu0 0
    %1225 = vmatpush1.bf16.msra.mxu0 %v1201
    %1226 = vmatprep.subr.bf16.mxu0 0
    %1227 = vmatpush1.bf16.msra.mxu0 0
    %1228 = vmatprep.subr.bf16.mxu0 0
    %1229 = vmatpush1.bf16.msra.mxu0 0
    %1230 = vmatprep.subr.bf16.mxu0 0
    %1231 = vmatpush1.bf16.msra.mxu0 0
    %1232 = vmatprep.subr.bf16.mxu0 0
    %1233 = vmatpush1.bf16.msra.mxu0 0
    %1234 = vmatprep.subr.bf16.mxu0 0
    %1235 = vmatpush1.bf16.msra.mxu0 0
    %1236 = vmatprep.subr.bf16.mxu0 0
    %1237 = vmatpush1.bf16.msra.mxu0 0
    %1238 = vmatprep.subr.bf16.mxu0 0
    %1239 = vmatpush1.bf16.msra.mxu0 0
    %1240 = vmatprep.subr.bf16.mxu0 0
    %1241 = vmatpush1.bf16.msra.mxu0 0
    %1242 = vmatprep.mubr.bf16.mxu0 0
    %1243 = vmatmul.mubr.bf16.gmra.mrb[0].mxu0 %v1138
    %v1244 = vpop.f32.mrb[0].mxu0
    %v1245 = vadd.f32 %v1160, %v1244
    %v1246 = vpop.f32.mrb[0].mxu0
    %v1247 = vpop.f32.mrb[0].mxu0
    %v1248 = vpop.f32.mrb[0].mxu0
    %1249 = vdwg.mxu0
    %1250 = vst [vmem:[#allocation19] sm:$0xff] %v680
    %1251 = vst [vmem:[#allocation19 + $0x8] sm:$0xff] %v906
    %1252 = vst [vmem:[#allocation19 + $0x10] sm:$0xff] %v1245
    // Predicated region
    $region110: #{tpu_custom_call.1} parent=1 // pred_check
      _
    $region111: #{tpu_custom_call.1} parent=1 // pred_check_branch
      %1254 = sbr.rel (0) target = $region113
    $region112: #{tpu_custom_call.1} parent=1 // pred_region
      %s1256 = ssub.s32 384, 384
      %1257 = vsyncadd [#allocation4], %s1256
      %s1259 = sshll.u32 [#allocation19], 4
      %s1260 = int_to_ptr.vmem [resolvable:$true] %s1259
      %1262 = dma.vmem_to_hbm [thread:$0]  %s1260, 384, %s17, [#allocation4]
    $region113: #{tpu_custom_call.1} parent=1 // pred_fallthru
      _
    // Predicated region
    $region114: #{tpu_custom_call.1} parent=1 // pred_check
      _
    $region115: #{tpu_custom_call.1} parent=1 // pred_check_branch
      %1264 = sbr.rel (0) target = $region117
    $region116: #{tpu_custom_call.1} parent=1 // pred_region
      %1265 = dma.done [#allocation4], 384
    $region117: #{tpu_custom_call.1} parent=1 // pred_fallthru
      _
    %1266 = vsyncpa [#allocation3], 1
    %1267 = vsyncpa [#allocation6], 1
    %1268 = vsyncpa [#allocation9], 1
    %1269 = vsyncpa [#allocation12], 1
    %1270 = vsyncpa [#allocation15], 1
    %1271 = vsyncpa [#allocation18], 1
    %1272 = vsyncpa [#allocation4], 1

</llo_original>
